<compile_context>
chip_gen: v5e
topology: v5e:2x2
jax: 0.10.0
libtpu: 0.0.40
codegen_flags: <defaults>
</compile_context>

<pallas_src>
import jax
import jax.numpy as jnp
from jax import lax
from jax.experimental import pallas as pl
from jax.experimental.pallas import tpu as pltpu

EPS = 1e-5
KH = KW = 3

# MXU operand dtype.  bf16 = full-rate MXU + half the input bytes; accumulation is
# always f32 (preferred_element_type).  Set to jnp.float32 only for bit-accurate
# f32 convs (3x MXU work + 2x input bytes).
MATMUL_DTYPE = jnp.bfloat16


def _vmem_capacity_bytes():
    """Per-core VMEM capacity; conservative 64 MiB (v7x) fallback."""
    try:
        info = pltpu.get_tpu_info()
    except Exception:
        return 64 * 1024 * 1024
    for attr in ("vmem_capacity_bytes", "vmem_size_bytes", "vmem_bytes"):
        v = getattr(info, attr, None)
        if v:
            return int(v)
    return 64 * 1024 * 1024


def _choose_tile_rows(N, H, W, Cin, itemsize, requested=None):
    """Pick output rows per grid step.

    Constraints: H % th == 0 (uniform tiles), th % 8 == 0 (8-row-aligned halo
    block), (th*W) % 128 == 0 (lane-dense output store).  Among valid tilings,
    take the largest raw input tile that fits a VMEM-aware budget (double
    buffering + im2col intermediates + f32 accumulator leave ~36x headroom),
    then back off if that would leave fewer than 2 grid steps (v7x megacore).
    """
    candidates = [th for th in range(8, H + 1, 8)
                  if H % th == 0 and (th * W) % 128 == 0]
    if requested is not None:
        if requested not in candidates:
            raise ValueError(f"tile_rows={requested} invalid for H={H}, W={W}")
        return requested
    if not candidates:
        # TODO(synk): ragged H/W would need masked edge tiles; not required here.
        raise NotImplementedError(f"no valid row tiling for H={H}, W={W}")
    vmem_cap = _vmem_capacity_bytes()
    budget = max(vmem_cap // 36, 256 * 1024)   # ~3.5 MiB on 128 MiB, ~1.8 MiB on 64 MiB
    fitting = [th for th in candidates if th * (W + 2) * Cin * itemsize <= budget]
    if not fitting:
        fitting = candidates[:1]
    best = fitting[-1]
    # Keep at least 2 grid steps so both v7x TensorCores get work.
    if N * (H // best) < 2:
        for th in reversed(fitting):
            if N * (H // th) >= 2:
                best = th
                break
    return best


def _conv_tile(xm_ref, xh_ref, w_ref):
    """3x3 conv for one (tile_rows x W) tile as 3 MXU matmuls of K = 3*Cin.

    xm_ref: (1, th, W+2, Cin)  main rows of the zero-padded NHWC input (bf16)
    xh_ref: (1, 8,  W+2, Cin)  8-row halo block; only its first 2 rows are used
    w_ref:  (Cout, 9*Cin)      weights, column order (ky*3 + kx)*Cin + ci
    returns (Cout, th*W) float32 conv result (no bias).

    Slices come straight from the refs (no unified rows copy, no separate
    column-shift stage) so peak VMEM intermediates stay small; the per-ky
    K=3*Cin patch is the only materialized im2col buffer at any time.
    """
    _, th, Wp, Cin = xm_ref.shape
    W = Wp - 2
    Cout = w_ref.shape[0]
    K3 = KW * Cin
    acc = jnp.zeros((Cout, th * W), jnp.float32)
    for ky in range(KH):
        if ky == 0:
            r = xm_ref[0]                                               # (th, Wp, Cin)
        else:
            r = jnp.concatenate([xm_ref[0, ky:th], xh_ref[0, 0:ky]], axis=0)
        patch = jnp.concatenate([r[:, kx:kx + W, :] for kx in range(KW)], axis=-1)
        patch = patch.reshape(th * W, K3)                               # (M, 3*Cin)
        wk = w_ref[:, ky * K3:(ky + 1) * K3]                            # (Cout, 3*Cin)
        # (Cout, K) x (M, K)^T -> (Cout, M): lane-dense result, f32 accumulation.
        acc = acc + lax.dot_general(
            wk, patch,
            dimension_numbers=(((1,), (1,)), ((), ())),
            preferred_element_type=jnp.float32)
    return acc                                                          # (Cout, th*W)


def _write_stats(acc_t, stats_ref):
    """Per-tile channel sum and *centered* second moment (Chan-combine friendly)."""
    m = acc_t.shape[1]
    s1 = jnp.sum(acc_t, axis=1, keepdims=True)                          # (Cout, 1)
    mt = s1 * (1.0 / m)
    d = acc_t - mt
    m2 = jnp.sum(d * d, axis=1, keepdims=True)                          # (Cout, 1)
    stats_ref[0, 0] = jnp.concatenate([s1, m2], axis=1)                 # (Cout, 2)


def conv_stats_kernel(xm_ref, xh_ref, w_ref, stats_ref):
    """Pass 1 (recompute path): per-tile partial batch stats of the conv output."""
    _write_stats(_conv_tile(xm_ref, xh_ref, w_ref), stats_ref)


def conv_stats_store_kernel(xm_ref, xh_ref, w_ref, stats_ref, conv_ref):
    """Pass 1 (store path): stats + lane-dense bf16 conv tile for the elementwise pass 2."""
    acc_t = _conv_tile(xm_ref, xh_ref, w_ref)                           # (Cout, M) f32
    conv_ref[0] = acc_t.astype(conv_ref.dtype)
    _write_stats(acc_t, stats_ref)


def conv_bn_relu_kernel(xm_ref, xh_ref, w_ref, scale_ref, shift_ref, o_ref):
    """Pass 2 (recompute path): conv tile -> fused BN affine -> ReLU, lane-dense store."""
    acc_t = _conv_tile(xm_ref, xh_ref, w_ref)                           # (Cout, M) f32
    y = acc_t * scale_ref[...] + shift_ref[...]                         # (Cout,1) broadcasts
    o_ref[0] = jnp.maximum(y, 0.0).astype(o_ref.dtype)


def bn_relu_kernel(conv_ref, scale_ref, shift_ref, o_ref):
    """Pass 2 (store path): pure elementwise scale/shift/ReLU over the stored conv."""
    y = conv_ref[0].astype(jnp.float32) * scale_ref[...] + shift_ref[...]
    o_ref[0] = jnp.maximum(y, 0.0).astype(o_ref.dtype)


def conv_batch_norm(x_nchw, w_oihw, bias, gamma, beta, *, tile_rows=None,
                    store_conv=None, out_dtype=jnp.float32, eps=EPS):
    """Forward pass equivalent to the PyTorch ConvBatchNorm module (training-mode BN).

    The conv bias cancels exactly under training-mode BatchNorm, so it is accepted
    for API fidelity but never used.  Set out_dtype=jnp.bfloat16 if the consumer
    tolerates it (halves output write traffic).
    """
    N, Cin, H, W = x_nchw.shape
    Cout = w_oihw.shape[0]
    dt = MATMUL_DTYPE
    th = _choose_tile_rows(N, H, W, Cin, jnp.dtype(dt).itemsize, tile_rows)
    nrt = H // th
    M = th * W
    Wp = W + 2
    if store_conv is None:
        # Recompute the conv in pass 2 for small / mem-bound layers; stash the bf16
        # conv once for compute-bound channel counts (notably on v7x's 3.2 TB/s HBM).
        store_conv = (Cin * Cout) >= (128 * 128)

    # Input prep (single materialization): NHWC + zero pad.  Rows padded (1 top,
    # 1+6 bottom) so the 8-row halo BlockSpec never reads out of bounds; the extra
    # 6 zero rows are never touched by compute.  Cast to bf16 here so the kernel
    # input DMA moves half the bytes.
    x_pad = jnp.pad(jnp.transpose(x_nchw, (0, 2, 3, 1)).astype(dt),
                    ((0, 0), (1, 7), (1, 1), (0, 0)))                   # (N, H+8, W+2, Cin)

    # Weights: (Cout, Cin, 3, 3) -> (Cout, 9*Cin), column order (ky*3 + kx)*Cin + ci.
    w_t = jnp.transpose(w_oihw, (0, 2, 3, 1)).reshape(Cout, KH * KW * Cin).astype(dt)

    grid = (N, nrt)
    xm_spec = pl.BlockSpec((1, th, Wp, Cin), lambda n, j: (n, j, 0, 0))
    xh_spec = pl.BlockSpec((1, 8, Wp, Cin), lambda n, j: (n, (j + 1) * (th // 8), 0, 0))
    w_spec = pl.BlockSpec((Cout, KH * KW * Cin), lambda n, j: (0, 0))
    stats_spec = pl.BlockSpec((1, 1, Cout, 2), lambda n, j: (n, j, 0, 0))
    conv_spec = pl.BlockSpec((1, Cout, M), lambda n, j: (n, 0, j))

    vmem_cap = _vmem_capacity_bytes()
    cparams = pltpu.CompilerParams(
        dimension_semantics=("parallel", "parallel"),
        # ~3/4 of per-core VMEM: 96 MiB on v5e/v6e (128 MiB), 48 MiB on v7x (64 MiB).
        vmem_limit_bytes=min((vmem_cap * 3) // 4, 96 * 1024 * 1024))

    conv_flops = int(2 * N * H * W * KH * KW * Cin * Cout)
    x_bytes = int(x_pad.size) * x_pad.dtype.itemsize
    stats_bytes = int(N * nrt * Cout * 2 * 4)
    conv_buf_bytes = int(N * Cout * H * W * jnp.dtype(dt).itemsize)
    out_bytes = int(N * Cout * H * W * jnp.dtype(out_dtype).itemsize)
    stats_shape = jax.ShapeDtypeStruct((N, nrt, Cout, 2), jnp.float32)

    # ---- Pass 1: batch statistics of the conv output (bias-free; bias cancels in BN).
    if store_conv:
        stats, conv_flat = pl.pallas_call(
            conv_stats_store_kernel,
            grid=grid,
            in_specs=[xm_spec, xh_spec, w_spec],
            out_specs=(stats_spec, conv_spec),
            out_shape=(stats_shape, jax.ShapeDtypeStruct((N, Cout, H * W), dt)),
            compiler_params=cparams,
            cost_estimate=pl.CostEstimate(
                flops=conv_flops, transcendentals=0,
                bytes_accessed=x_bytes + stats_bytes + conv_buf_bytes),
        )(x_pad, x_pad, w_t)
    else:
        stats = pl.pallas_call(
            conv_stats_kernel,
            grid=grid,
            in_specs=[xm_spec, xh_spec, w_spec],
            out_specs=stats_spec,
            out_shape=stats_shape,
            compiler_params=cparams,
            cost_estimate=pl.CostEstimate(
                flops=conv_flops, transcendentals=0,
                bytes_accessed=x_bytes + stats_bytes),
        )(x_pad, x_pad, w_t)

    # Combine per-tile (sum, centered-M2) with Chan's parallel formula: numerically
    # stable, unlike E[x^2] - E[x]^2.
    cnt = float(N * H * W)
    s1 = stats[..., 0]                                   # (N, nrt, Cout) tile sums
    m2 = stats[..., 1]                                   # centered second moments
    mean_conv = jnp.sum(s1, axis=(0, 1)) / cnt           # (Cout,)
    m_t = s1 * (1.0 / M)                                 # per-tile means
    var = (jnp.sum(m2, axis=(0, 1))
           + float(M) * jnp.sum((m_t - mean_conv) ** 2, axis=(0, 1))) / cnt
    var = jnp.maximum(var, 0.0)
    inv_std = lax.rsqrt(var + eps)
    scale = gamma.astype(jnp.float32) * inv_std
    # Conv bias shifts the batch mean by the same amount, so it cancels exactly:
    # y = (conv - mean_conv) * scale + beta.
    shift = beta.astype(jnp.float32) - mean_conv * scale
    scale2 = scale.reshape(Cout, 1)
    shift2 = shift.reshape(Cout, 1)
    sc_spec = pl.BlockSpec((Cout, 1), lambda n, j: (0, 0))

    # ---- Pass 2: fused affine -> ReLU, stored directly as flattened NCHW
    # (N, Cout, H*W), lane-dense in th*W (no output transpose needed).
    out_shape = jax.ShapeDtypeStruct((N, Cout, H * W), out_dtype)
    if store_conv:
        out_flat = pl.pallas_call(
            bn_relu_kernel,
            grid=grid,
            in_specs=[conv_spec, sc_spec, sc_spec],
            out_specs=conv_spec,
            out_shape=out_shape,
            compiler_params=cparams,
            cost_estimate=pl.CostEstimate(
                flops=int(2 * N * Cout * H * W), transcendentals=0,
                bytes_accessed=conv_buf_bytes + out_bytes),
        )(conv_flat, scale2, shift2)
    else:
        out_flat = pl.pallas_call(
            conv_bn_relu_kernel,
            grid=grid,
            in_specs=[xm_spec, xh_spec, w_spec, sc_spec, sc_spec],
            out_specs=conv_spec,
            out_shape=out_shape,
            compiler_params=cparams,
            cost_estimate=pl.CostEstimate(
                flops=conv_flops, transcendentals=0,
                bytes_accessed=x_bytes + out_bytes),
        )(x_pad, x_pad, w_t, scale2, shift2)

    return out_flat.reshape(N, Cout, H, W)               # free: same memory order


def _reference(x_nchw, w_oihw, bias, gamma, beta):
    conv = lax.conv_general_dilated(
        x_nchw.astype(jnp.float32), w_oihw.astype(jnp.float32),
        window_strides=(1, 1), padding="SAME",
        dimension_numbers=("NCHW", "OIHW", "NCHW"),
        precision=lax.Precision.HIGHEST)
    conv = conv + bias[None, :, None, None]
    mean = conv.mean(axis=(0, 2, 3), keepdims=True)
    var = ((conv - mean) ** 2).mean(axis=(0, 2, 3), keepdims=True)
    y = (conv - mean) / jnp.sqrt(var + EPS)
    y = y * gamma[None, :, None, None] + beta[None, :, None, None]
    return jnp.maximum(y, 0.0)


if __name__ == "__main__":
    key = jax.random.PRNGKey(0)
    N, Cin, Cout, H, W = 2, 4, 8, 16, 16

    k_x, k_w, k_b, k_g, k_beta = jax.random.split(key, 5)
    x = jax.random.normal(k_x, (N, Cin, H, W), dtype=jnp.float32)
    w = jax.random.normal(k_w, (Cout, Cin, KH, KW), dtype=jnp.float32) * 0.1
    b = jax.random.normal(k_b, (Cout,), dtype=jnp.float32) * 0.1
    gamma = 1.0 + 0.1 * jax.random.normal(k_g, (Cout,), dtype=jnp.float32)
    beta = 0.1 * jax.random.normal(k_beta, (Cout,), dtype=jnp.float32)

    ref_f32 = _reference(x, w, b, gamma, beta)
    # Reference with bf16-rounded operands: isolates accumulation-order differences
    # from the (intentional) bf16 operand quantization of the kernel.
    ref_bf16 = _reference(x.astype(jnp.bfloat16).astype(jnp.float32),
                          w.astype(jnp.bfloat16).astype(jnp.float32), b, gamma, beta)

    # Auto tile choice (th=16 -> one tile per image; recompute path at these channels).
    out = conv_batch_norm(x, w, b, gamma, beta)
    jax.block_until_ready(out)
    assert out.shape == (N, Cout, H, W)
    err_bf = float(jnp.max(jnp.abs(out - ref_bf16)))
    assert err_bf < 5e-3, err_bf
    err_f32 = float(jnp.max(jnp.abs(out - ref_f32)))
    assert err_f32 < 5e-2 * float(jnp.max(jnp.abs(ref_f32)) + 1e-6), err_f32

    # Explicit 8-row tiles: exercises the multi-tile halo/index_map path.
    out2 = conv_batch_norm(x, w, b, gamma, beta, tile_rows=8)
    jax.block_until_ready(out2)
    err2 = float(jnp.max(jnp.abs(out2 - ref_bf16)))
    assert err2 < 5e-3, err2

    # Store-the-conv path (pass 1 writes a bf16 conv buffer, pass 2 is elementwise).
    out3 = conv_batch_norm(x, w, b, gamma, beta, store_conv=True)
    jax.block_until_ready(out3)
    err3 = float(jnp.max(jnp.abs(out3 - ref_f32)))
    assert err3 < 5e-2 * float(jnp.max(jnp.abs(ref_f32)) + 1e-6), err3

    print("KERNEL_OK")
</pallas_src>

<mosaic_0001>
module attributes {stable_mosaic.version = 11 : i64} {
  func.func @conv_stats_kernel(%arg0: i32, %arg1: i32, %arg2: memref<1x16x18x4xbf16, #tpu.memory_space<vmem>>, %arg3: memref<1x8x18x4xbf16, #tpu.memory_space<vmem>>, %arg4: memref<8x36xbf16, #tpu.memory_space<vmem>>, %arg5: memref<1x1x8x2xf32, #tpu.memory_space<vmem>>) attributes {dimension_semantics = [#tpu.dimension_semantics<parallel>, #tpu.dimension_semantics<parallel>], iteration_bounds = array<i64: 2, 1>, scalar_prefetch = 0 : i64, scratch_operands = 0 : i64, tpu.core_type = #tpu.core_type<tc>, window_params = [{transform_indices = @transform_0, window_bounds = array<i64: 1, 16, 18, 4>}, {transform_indices = @transform_1, window_bounds = array<i64: 1, 8, 18, 4>}, {pipeline_mode = #tpu.pipeline_mode<synchronous>, transform_indices = @transform_2, window_bounds = array<i64: 8, 36>}, {transform_indices = @transform_3, window_bounds = array<i64: 1, 1, 8, 2>}]} {
    %cst = arith.constant 0.000000e+00 : f32
    %0 = vector.broadcast %cst : f32 to vector<8x256xf32>
    %c0 = arith.constant 0 : index
    %c0_0 = arith.constant 0 : index
    %c0_1 = arith.constant 0 : index
    %c0_2 = arith.constant 0 : index
    %1 = vector.load %arg2[%c0, %c0_0, %c0_1, %c0_2] : memref<1x16x18x4xbf16, #tpu.memory_space<vmem>>, vector<1x16x18x4xbf16>
    %2 = vector.shape_cast %1 : vector<1x16x18x4xbf16> to vector<16x18x4xbf16>
    %3 = vector.extract_strided_slice %2 {offsets = [0, 0, 0], sizes = [16, 16, 4], strides = [1, 1, 1]} : vector<16x18x4xbf16> to vector<16x16x4xbf16>
    %4 = vector.extract_strided_slice %2 {offsets = [0, 1, 0], sizes = [16, 16, 4], strides = [1, 1, 1]} : vector<16x18x4xbf16> to vector<16x16x4xbf16>
    %5 = vector.extract_strided_slice %2 {offsets = [0, 2, 0], sizes = [16, 16, 4], strides = [1, 1, 1]} : vector<16x18x4xbf16> to vector<16x16x4xbf16>
    %6 = tpu.concatenate %3, %4, %5 in 2 : vector<16x16x4xbf16>, vector<16x16x4xbf16>, vector<16x16x4xbf16> -> vector<16x16x12xbf16>
    %7 = vector.shape_cast %6 : vector<16x16x12xbf16> to vector<256x12xbf16>
    %c0_3 = arith.constant 0 : index
    %c0_4 = arith.constant 0 : index
    %8 = vector.load %arg4[%c0_3, %c0_4] : memref<8x36xbf16, #tpu.memory_space<vmem>>, vector<8x12xbf16>
    %cst_5 = arith.constant dense<0.000000e+00> : vector<8x256xf32>
    %9 = tpu.matmul %8, %7, %cst_5 {dimension_numbers = #tpu.dot_dimension_numbers<[1], [1], [0], [0], [0, 0, 1, 0], [], []>} : vector<8x12xbf16>, vector<256x12xbf16>, vector<8x256xf32> -> vector<8x256xf32>
    %10 = arith.addf %0, %9 : vector<8x256xf32>
    %c0_6 = arith.constant 0 : index
    %c1 = arith.constant 1 : index
    %c0_7 = arith.constant 0 : index
    %c0_8 = arith.constant 0 : index
    %11 = vector.load %arg2[%c0_6, %c1, %c0_7, %c0_8] : memref<1x16x18x4xbf16, #tpu.memory_space<vmem>>, vector<1x15x18x4xbf16>
    %12 = vector.shape_cast %11 : vector<1x15x18x4xbf16> to vector<15x18x4xbf16>
    %c0_9 = arith.constant 0 : index
    %c0_10 = arith.constant 0 : index
    %c0_11 = arith.constant 0 : index
    %c0_12 = arith.constant 0 : index
    %13 = vector.load %arg3[%c0_9, %c0_10, %c0_11, %c0_12] : memref<1x8x18x4xbf16, #tpu.memory_space<vmem>>, vector<1x1x18x4xbf16>
    %14 = vector.shape_cast %13 : vector<1x1x18x4xbf16> to vector<1x18x4xbf16>
    %15 = tpu.concatenate %12, %14 in 0 : vector<15x18x4xbf16>, vector<1x18x4xbf16> -> vector<16x18x4xbf16>
    %16 = vector.extract_strided_slice %15 {offsets = [0, 0, 0], sizes = [16, 16, 4], strides = [1, 1, 1]} : vector<16x18x4xbf16> to vector<16x16x4xbf16>
    %17 = vector.extract_strided_slice %15 {offsets = [0, 1, 0], sizes = [16, 16, 4], strides = [1, 1, 1]} : vector<16x18x4xbf16> to vector<16x16x4xbf16>
    %18 = vector.extract_strided_slice %15 {offsets = [0, 2, 0], sizes = [16, 16, 4], strides = [1, 1, 1]} : vector<16x18x4xbf16> to vector<16x16x4xbf16>
    %19 = tpu.concatenate %16, %17, %18 in 2 : vector<16x16x4xbf16>, vector<16x16x4xbf16>, vector<16x16x4xbf16> -> vector<16x16x12xbf16>
    %20 = vector.shape_cast %19 : vector<16x16x12xbf16> to vector<256x12xbf16>
    %c0_13 = arith.constant 0 : index
    %c12 = arith.constant 12 : index
    %21 = vector.load %arg4[%c0_13, %c12] : memref<8x36xbf16, #tpu.memory_space<vmem>>, vector<8x12xbf16>
    %cst_14 = arith.constant dense<0.000000e+00> : vector<8x256xf32>
    %22 = tpu.matmul %21, %20, %cst_14 {dimension_numbers = #tpu.dot_dimension_numbers<[1], [1], [0], [0], [0, 0, 1, 0], [], []>} : vector<8x12xbf16>, vector<256x12xbf16>, vector<8x256xf32> -> vector<8x256xf32>
    %23 = arith.addf %10, %22 : vector<8x256xf32>
    %c0_15 = arith.constant 0 : index
    %c2 = arith.constant 2 : index
    %c0_16 = arith.constant 0 : index
    %c0_17 = arith.constant 0 : index
    %24 = vector.load %arg2[%c0_15, %c2, %c0_16, %c0_17] : memref<1x16x18x4xbf16, #tpu.memory_space<vmem>>, vector<1x14x18x4xbf16>
    %25 = vector.shape_cast %24 : vector<1x14x18x4xbf16> to vector<14x18x4xbf16>
    %c0_18 = arith.constant 0 : index
    %c0_19 = arith.constant 0 : index
    %c0_20 = arith.constant 0 : index
    %c0_21 = arith.constant 0 : index
    %26 = vector.load %arg3[%c0_18, %c0_19, %c0_20, %c0_21] : memref<1x8x18x4xbf16, #tpu.memory_space<vmem>>, vector<1x2x18x4xbf16>
    %27 = vector.shape_cast %26 : vector<1x2x18x4xbf16> to vector<2x18x4xbf16>
    %28 = tpu.concatenate %25, %27 in 0 : vector<14x18x4xbf16>, vector<2x18x4xbf16> -> vector<16x18x4xbf16>
    %29 = vector.extract_strided_slice %28 {offsets = [0, 0, 0], sizes = [16, 16, 4], strides = [1, 1, 1]} : vector<16x18x4xbf16> to vector<16x16x4xbf16>
    %30 = vector.extract_strided_slice %28 {offsets = [0, 1, 0], sizes = [16, 16, 4], strides = [1, 1, 1]} : vector<16x18x4xbf16> to vector<16x16x4xbf16>
    %31 = vector.extract_strided_slice %28 {offsets = [0, 2, 0], sizes = [16, 16, 4], strides = [1, 1, 1]} : vector<16x18x4xbf16> to vector<16x16x4xbf16>
    %32 = tpu.concatenate %29, %30, %31 in 2 : vector<16x16x4xbf16>, vector<16x16x4xbf16>, vector<16x16x4xbf16> -> vector<16x16x12xbf16>
    %33 = vector.shape_cast %32 : vector<16x16x12xbf16> to vector<256x12xbf16>
    %c0_22 = arith.constant 0 : index
    %c24 = arith.constant 24 : index
    %34 = vector.load %arg4[%c0_22, %c24] : memref<8x36xbf16, #tpu.memory_space<vmem>>, vector<8x12xbf16>
    %cst_23 = arith.constant dense<0.000000e+00> : vector<8x256xf32>
    %35 = tpu.matmul %34, %33, %cst_23 {dimension_numbers = #tpu.dot_dimension_numbers<[1], [1], [0], [0], [0, 0, 1, 0], [], []>} : vector<8x12xbf16>, vector<256x12xbf16>, vector<8x256xf32> -> vector<8x256xf32>
    %36 = arith.addf %23, %35 : vector<8x256xf32>
    %cst_24 = arith.constant dense<0.000000e+00> : vector<8xf32>
    %37 = vector.multi_reduction <add>, %36, %cst_24 [1] : vector<8x256xf32> to vector<8xf32>
    %38 = vector.shape_cast %37 : vector<8xf32> to vector<8x1xf32>
    %cst_25 = arith.constant 3.906250e-03 : f32
    %39 = vector.broadcast %cst_25 : f32 to vector<8x1xf32>
    %40 = arith.mulf %38, %39 : vector<8x1xf32>
    %41 = vector.broadcast %40 : vector<8x1xf32> to vector<8x256xf32>
    %42 = arith.subf %36, %41 : vector<8x256xf32>
    %43 = arith.mulf %42, %42 : vector<8x256xf32>
    %cst_26 = arith.constant dense<0.000000e+00> : vector<8xf32>
    %44 = vector.multi_reduction <add>, %43, %cst_26 [1] : vector<8x256xf32> to vector<8xf32>
    %45 = vector.shape_cast %44 : vector<8xf32> to vector<8x1xf32>
    %46 = tpu.concatenate %38, %45 in 1 : vector<8x1xf32>, vector<8x1xf32> -> vector<8x2xf32>
    %c0_27 = arith.constant 0 : index
    %c0_28 = arith.constant 0 : index
    %c0_29 = arith.constant 0 : index
    %c0_30 = arith.constant 0 : index
    %47 = vector.load %arg5[%c0_27, %c0_28, %c0_29, %c0_30] : memref<1x1x8x2xf32, #tpu.memory_space<vmem>>, vector<1x1x8x2xf32>
    %48 = vector.shape_cast %47 : vector<1x1x8x2xf32> to vector<8x2xf32>
    %49 = vector.shape_cast %46 : vector<8x2xf32> to vector<1x1x8x2xf32>
    tpu.vector_store %arg5[%c0_27, %c0_28, %c0_29, %c0_30], %49 {strides = array<i32>} : memref<1x1x8x2xf32, #tpu.memory_space<vmem>>, vector<1x1x8x2xf32>,
    return
  }
  func.func @transform_0(%arg0: i32, %arg1: i32) -> (i32, i32, i32, i32) {
    %c0_i32 = arith.constant 0 : i32
    %c0_i32_0 = arith.constant 0 : i32
    %c0_i32_1 = arith.constant 0 : i32
    return %arg0, %arg1, %c0_i32, %c0_i32_0 : i32, i32, i32, i32
  }
  func.func @transform_1(%arg0: i32, %arg1: i32) -> (i32, i32, i32, i32) {
    %c1_i32 = arith.constant 1 : i32
    %0 = arith.addi %arg1, %c1_i32 : i32
    %c2_i32 = arith.constant 2 : i32
    %1 = arith.muli %0, %c2_i32 : i32
    %c0_i32 = arith.constant 0 : i32
    %c0_i32_0 = arith.constant 0 : i32
    %c0_i32_1 = arith.constant 0 : i32
    return %arg0, %1, %c0_i32, %c0_i32_0 : i32, i32, i32, i32
  }
  func.func @transform_2(%arg0: i32, %arg1: i32) -> (i32, i32) {
    %c0_i32 = arith.constant 0 : i32
    %c0_i32_0 = arith.constant 0 : i32
    %c0_i32_1 = arith.constant 0 : i32
    return %c0_i32, %c0_i32_0 : i32, i32
  }
  func.func @transform_3(%arg0: i32, %arg1: i32) -> (i32, i32, i32, i32) {
    %c0_i32 = arith.constant 0 : i32
    %c0_i32_0 = arith.constant 0 : i32
    %c0_i32_1 = arith.constant 0 : i32
    return %arg0, %arg1, %c0_i32, %c0_i32_0 : i32, i32, i32, i32
  }
}

</mosaic_0001>

<llo_original>
// kernel: tpu_custom_call.1
$region0: #{tpu_custom_call.1}
  #allocation0 [shape = 'u32[]', space=smem, size = 0x4, offset = 0x4, fixed_abs, tag = 'smem constant byte address 0x4 - core index']
  #allocation1 [shape = 'u32[72,128]{1,0:T(1,128)}', space=vmem, size = 0x9000, scoped, tag = 'internal scratch']
  %s0 = inlined_call_operand.vmem [shape: bf16[2,24,18,4], index: 0, kind: input, shape index: {}]
  %s1 = inlined_call_operand.vmem [shape: bf16[2,24,18,4], index: 1, kind: input, shape index: {}]
  %s2 = inlined_call_operand.vmem [shape: bf16[8,36], index: 2, kind: input, shape index: {}]
  %s3 = inlined_call_operand.vmem [shape: f32[2,1,8,2], index: 3, kind: output, shape index: {}]
  %s4 = sld [smem:[#allocation0]]
  $region45: #{tpu_custom_call.1} parent=0
    _
  %s6 = ssub.s32 1, %s4
  %s7 = scalar_select 0, %s6, %s4
  loop: start=0, step=1, limit=4
  $region2: #{tpu_custom_call.1} parent=0 // loop_pre_header
    _
  $region3: #{tpu_custom_call.1} parent=0 // loop_header
    %s9 = sphi 0, %s13
    %p10 = scmp.ge.s32.totalorder %s9, 4
    %s16 = sphi 0, %s28
    %s17 = sphi 0, %s24
    %s18 = sphi 0, %s16
    %s19 = sphi 0, %s17
    %s20 = sphi 0, %s18
    %s21 = sphi 0, %s19
    %s33 = sphi 0, %s35
    %s36 = sphi 0, %s33
    %s37 = sphi 0, %s36
    %s53 = sphi 0, %s37
    %s65 = sphi 0, %s67
    %s68 = sphi 0, %s65
    %s69 = sphi 0, %s68
    %s85 = sphi 0, %s69
    %s89 = sphi 0, %s89
    %s91 = sphi 0, %s89
    %s92 = sphi 0, %s91
    %s106 = sphi 0, %s92
    %s114 = sphi 0, %s116
    %s117 = sphi 0, %s114
    %s118 = sphi 0, %s117
    %s134 = sphi 0, %s118
  $region4: #{tpu_custom_call.1} parent=0 // loop_header_branch
    %12 = sbr.rel (%p10) target = $region8
  $region5: #{tpu_custom_call.1} parent=0 // loop_body
    %s14 = ssub.s32 %s9, 1
    %s15 = ssub.s32 %s9, 2
    %s22 = sadd.s32 1, %s17
    %p23 = scmp.ge.s32.totalorder %s22, 1
    %s24 = scalar_select %p23, 0, %s22
    %s25 = sadd.s32 1, %s16
    %s26 = scalar_select %p23, %s25, %s16
    %p27 = scmp.ge.s32.totalorder %s26, 2
    %s28 = scalar_select %p27, 0, %s26
    %s29 = ssub.s32 %s16, %s28
    %s30 = ssub.s32 %s17, %s24
    %s31 = sor.u32 %s29, %s30
    %p32 = scmp.eq.s32.totalorder %s31, 0
    %s34 = sadd.s32 %s33, 1
    %s35 = scalar_select %p32, %s33, %s34
    %p38 = pneg %p32
    %p39 = scmp.eq.s32.totalorder %s9, 1
    %p40 = por %p38, %p39
    %p41 = scmp.ne.s32.totalorder %s33, %s36
    %p42 = scmp.eq.s32.totalorder %s9, 0
    %p43 = por %p41, %p42
    %p44 = scmp.ne.s32.totalorder %s33, %s36
    %p45 = scmp.eq.s32.totalorder %s14, 1
    %p46 = por %p44, %p45
    %p47 = scmp.ne.s32.totalorder %s36, %s37
    %p48 = scmp.eq.s32.totalorder %s14, 0
    %p49 = por %p47, %p48
    %p50 = scmp.ne.s32.totalorder %s36, %s37
    %p51 = scmp.eq.s32.totalorder %s15, 1
    %p52 = por %p50, %p51
    %p54 = scmp.ne.s32.totalorder %s37, %s53
    %p55 = scmp.eq.s32.totalorder %s15, 0
    %p56 = por %p54, %p55
    %s57 = sadd.s32 %s17, 1
    %s58 = smul.u32 %s57, 2
    %s59 = sadd.s32 %s24, 1
    %s60 = smul.u32 %s59, 2
    %s61 = ssub.s32 %s16, %s28
    %s62 = ssub.s32 %s58, %s60
    %s63 = sor.u32 %s61, %s62
    %p64 = scmp.eq.s32.totalorder %s63, 0
    %s66 = sadd.s32 %s65, 1
    %s67 = scalar_select %p64, %s65, %s66
    %p70 = pneg %p64
    %p71 = scmp.eq.s32.totalorder %s9, 1
    %p72 = por %p70, %p71
    %p73 = scmp.ne.s32.totalorder %s65, %s68
    %p74 = scmp.eq.s32.totalorder %s9, 0
    %p75 = por %p73, %p74
    %p76 = scmp.ne.s32.totalorder %s65, %s68
    %p77 = scmp.eq.s32.totalorder %s14, 1
    %p78 = por %p76, %p77
    %p79 = scmp.ne.s32.totalorder %s68, %s69
    %p80 = scmp.eq.s32.totalorder %s14, 0
    %p81 = por %p79, %p80
    %p82 = scmp.ne.s32.totalorder %s68, %s69
    %p83 = scmp.eq.s32.totalorder %s15, 1
    %p84 = por %p82, %p83
    %p86 = scmp.ne.s32.totalorder %s69, %s85
    %p87 = scmp.eq.s32.totalorder %s15, 0
    %p88 = por %p86, %p87
    %s90 = sadd.s32 %s89, 1
    %p93 = scmp.eq.s32.totalorder %s9, 1
    %p94 = scmp.ne.s32.totalorder %s89, %s91
    %p95 = scmp.eq.s32.totalorder %s9, 0
    %p96 = por %p94, %p95
    %p97 = scmp.ne.s32.totalorder %s89, %s91
    %p98 = scmp.eq.s32.totalorder %s14, 1
    %p99 = por %p97, %p98
    %p100 = scmp.ne.s32.totalorder %s91, %s92
    %p101 = scmp.eq.s32.totalorder %s14, 0
    %p102 = por %p100, %p101
    %p103 = scmp.ne.s32.totalorder %s91, %s92
    %p104 = scmp.eq.s32.totalorder %s15, 1
    %p105 = por %p103, %p104
    %p107 = scmp.ne.s32.totalorder %s92, %s106
    %p108 = scmp.eq.s32.totalorder %s15, 0
    %p109 = por %p107, %p108
    %s110 = ssub.s32 %s16, %s28
    %s111 = ssub.s32 %s17, %s24
    %s112 = sor.u32 %s110, %s111
    %p113 = scmp.eq.s32.totalorder %s112, 0
    %s115 = sadd.s32 %s114, 1
    %s116 = scalar_select %p113, %s114, %s115
    %p119 = pneg %p113
    %p120 = scmp.eq.s32.totalorder %s9, 1
    %p121 = por %p119, %p120
    %p122 = scmp.ne.s32.totalorder %s114, %s117
    %p123 = scmp.eq.s32.totalorder %s9, 0
    %p124 = por %p122, %p123
    %p125 = scmp.ne.s32.totalorder %s114, %s117
    %p126 = scmp.eq.s32.totalorder %s14, 1
    %p127 = por %p125, %p126
    %p128 = scmp.ne.s32.totalorder %s117, %s118
    %p129 = scmp.eq.s32.totalorder %s14, 0
    %p130 = por %p128, %p129
    %p131 = scmp.ne.s32.totalorder %s117, %s118
    %p132 = scmp.eq.s32.totalorder %s15, 1
    %p133 = por %p131, %p132
    %p135 = scmp.ne.s32.totalorder %s118, %s134
    %p136 = scmp.eq.s32.totalorder %s15, 0
    %p137 = por %p135, %p136
    %p138 = scmp.le.s32.totalorder 1, %s9
    %p139 = scmp.lt.s32.totalorder %s9, 3
    %p140 = pnand %p138, %p139
    %p141 = pneg %p140
    // Predicated region
    $region9: #{tpu_custom_call.1} parent=5 // pred_check
      _
    $region10: #{tpu_custom_call.1} parent=5 // pred_check_branch
      %143 = sbr.rel (%p140) target = $region12
    $region11: #{tpu_custom_call.1} parent=5 // pred_region
      %s144 = ssub.s32 %s9, 1
      // Predicated region
      $region13: #{tpu_custom_call.1} parent=11 // pred_check
        %p145 = pneg %p102
      $region14: #{tpu_custom_call.1} parent=11 // pred_check_branch
        %147 = sbr.rel (%p145) target = $region16
      $region15: #{tpu_custom_call.1} parent=11 // pred_region
        _
      $region16: #{tpu_custom_call.1} parent=11 // pred_fallthru
        _
    $region12: #{tpu_custom_call.1} parent=5 // pred_fallthru
      _
    %p148 = scmp.lt.s32.totalorder %s9, 2
    // Predicated region
    $region17: #{tpu_custom_call.1} parent=5 // pred_check
      %p149 = pneg %p148
    $region18: #{tpu_custom_call.1} parent=5 // pred_check_branch
      %151 = sbr.rel (%p149) target = $region20
    $region19: #{tpu_custom_call.1} parent=5 // pred_region
      // Predicated region
      $region21: #{tpu_custom_call.1} parent=19 // pred_check
        %p152 = pneg %p43
      $region22: #{tpu_custom_call.1} parent=19 // pred_check_branch
        %154 = sbr.rel (%p152) target = $region24
      $region23: #{tpu_custom_call.1} parent=19 // pred_region
        %s155 = smul.u32 16, %s17
        %s156 = ssub.s32 24, %s155
        %p157 = scmp.lt.s32.totalorder %s156, 16
        %s158 = scalar_select %p157, %s156, 16
        %s159 = smul.u32 4, %s158
        %s160 = smul.u32 %s159, 3
        %p161 = scmp.lt.s32.totalorder %s16, 1
        %s162 = scalar_select %p161, %s16, 1
        %p163 = scmp.lt.s32.totalorder %s155, 23
        %s164 = scalar_select %p163, %s155, 23
        %s165 = smul.addr %s164, 3
        %s166 = smul.addr %s162, 72
        %s167 = sadd.s32 %s165, %s166
        %s168 = smul.addr %s167, 4
        %s169 = scalar_lea.vmem %s0, %s168
        %s170 = smul.u32 16, %s17
        %s171 = ssub.s32 24, %s170
        %p172 = scmp.lt.s32.totalorder %s171, 16
        %s173 = scalar_select %p172, %s171, 16
        %s174 = smul.u32 4, %s173
        %s175 = smul.u32 %s174, 3
      $region24: #{tpu_custom_call.1} parent=19 // pred_fallthru
        _
      // Predicated region
      $region25: #{tpu_custom_call.1} parent=19 // pred_check
        %p176 = pneg %p75
      $region26: #{tpu_custom_call.1} parent=19 // pred_check_branch
        %178 = sbr.rel (%p176) target = $region28
      $region27: #{tpu_custom_call.1} parent=19 // pred_region
        %s179 = sadd.s32 %s17, 1
        %s180 = smul.u32 %s179, 2
        %s181 = smul.u32 8, %s180
        %p182 = scmp.lt.s32.totalorder %s16, 1
        %s183 = scalar_select %p182, %s16, 1
        %p184 = scmp.lt.s32.totalorder %s181, 23
        %s185 = scalar_select %p184, %s181, 23
        %s186 = smul.addr %s185, 3
        %s187 = smul.addr %s183, 72
        %s188 = sadd.s32 %s186, %s187
        %s189 = smul.addr %s188, 4
        %s190 = scalar_lea.vmem %s1, %s189
        %s191 = sadd.s32 %s17, 1
        %s192 = smul.u32 %s191, 2
        %s193 = smul.u32 8, %s192
      $region28: #{tpu_custom_call.1} parent=19 // pred_fallthru
        _
    $region20: #{tpu_custom_call.1} parent=5 // pred_fallthru
      _
    %p194 = scmp.le.s32.totalorder 1, %s9
    %p195 = scmp.lt.s32.totalorder %s9, 3
    %p196 = pnand %p194, %p195
    %p197 = pneg %p196
    // Predicated region
    $region29: #{tpu_custom_call.1} parent=5 // pred_check
      _
    $region30: #{tpu_custom_call.1} parent=5 // pred_check_branch
      %199 = sbr.rel (%p196) target = $region32
    $region31: #{tpu_custom_call.1} parent=5 // pred_region
      %s200 = ssub.s32 %s9, 1
      %s201 = smul.u32 16, %s19
      %s202 = ssub.s32 24, %s201
      %p203 = scmp.lt.s32.totalorder %s202, 16
      %s204 = scalar_select %p203, %s202, 16
      %s205 = smul.u32 4, %s204
      %s206 = smul.u32 %s205, 3
      %p207 = scmp.lt.s32.totalorder %s18, 1
      %s208 = scalar_select %p207, %s18, 1
      %p209 = scmp.lt.s32.totalorder %s201, 23
      %s210 = scalar_select %p209, %s201, 23
      %s211 = smul.addr %s210, 3
      %s212 = smul.addr %s208, 72
      %s213 = sadd.s32 %s211, %s212
      %s214 = smul.addr %s213, 4
      %s215 = scalar_lea.vmem %s0, %s214
      %p216 = pneg %p49
      %p217 = pneg %p46
      %s218 = sadd.s32 %s19, 1
      %s219 = smul.u32 %s218, 2
      %s220 = smul.u32 8, %s219
      %p221 = scmp.lt.s32.totalorder %s18, 1
      %s222 = scalar_select %p221, %s18, 1
      %p223 = scmp.lt.s32.totalorder %s220, 23
      %s224 = scalar_select %p223, %s220, 23
      %s225 = smul.addr %s224, 3
      %s226 = smul.addr %s222, 72
      %s227 = sadd.s32 %s225, %s226
      %s228 = smul.addr %s227, 4
      %s229 = scalar_lea.vmem %s1, %s228
      %p230 = pneg %p81
      %p231 = pneg %p78
      %p232 = pneg %p102
      %p233 = pneg %p99
      %p234 = pneg %p130
      %p235 = pneg %p127
      %p236 = scmp.lt.s32.totalorder %s18, 1
      %s237 = scalar_select %p236, %s18, 1
      %p238 = scmp.lt.s32.totalorder %s19, 0
      %s239 = scalar_select %p238, %s19, 0
      %s240 = sadd.s32 %s239, %s237
      %s241 = smul.addr %s240, 8
      %s242 = scalar_lea.vmem %s3, %s241
      %s243 = smul.u32 16, %s19
      %s244 = ssub.s32 24, %s243
      %p245 = scmp.lt.s32.totalorder %s244, 16
      %s246 = scalar_select %p245, %s244, 16
      %s247 = smul.u32 4, %s246
      %s248 = smul.u32 %s247, 3
      %p249 = scmp.lt.s32.totalorder %s18, 1
      %s250 = scalar_select %p249, %s18, 1
      %p251 = scmp.lt.s32.totalorder %s243, 23
      %s252 = scalar_select %p251, %s243, 23
      %s253 = smul.addr %s252, 3
      %s254 = smul.addr %s250, 72
      %s255 = sadd.s32 %s253, %s254
      %s256 = smul.addr %s255, 4
      %s257 = scalar_lea.vmem %s0, %s256
      %s258 = smul.u32 16, %s19
      %s259 = ssub.s32 24, %s258
      %p260 = scmp.lt.s32.totalorder %s259, 16
      %s261 = scalar_select %p260, %s259, 16
      %s262 = smul.u32 4, %s261
      %s263 = smul.u32 %s262, 3
      %s264 = sadd.s32 %s19, 1
      %s265 = smul.u32 %s264, 2
      %s266 = smul.u32 8, %s265
      %p267 = scmp.lt.s32.totalorder %s18, 1
      %s268 = scalar_select %p267, %s18, 1
      %p269 = scmp.lt.s32.totalorder %s266, 23
      %s270 = scalar_select %p269, %s266, 23
      %s271 = smul.addr %s270, 3
      %s272 = smul.addr %s268, 72
      %s273 = sadd.s32 %s271, %s272
      %s274 = smul.addr %s273, 4
      %s275 = scalar_lea.vmem %s1, %s274
      %s276 = sadd.s32 %s19, 1
      %s277 = smul.u32 %s276, 2
      %s278 = smul.u32 8, %s277
      %p279 = scmp.lt.s32.totalorder %s18, 1
      %s280 = scalar_select %p279, %s18, 1
      %p281 = scmp.lt.s32.totalorder %s19, 0
      %s282 = scalar_select %p281, %s19, 0
      %s283 = sadd.s32 %s282, %s280
      %s284 = smul.addr %s283, 8
      %s285 = scalar_lea.vmem %s3, %s284
      %v286 = vld [vmem:[%s257] sm:$0xf]
      %v287 = vld [vmem:[%s257 + $0x4] sm:$0xf]
      %v288 = vld [vmem:[%s257 + $0x8] sm:$0x1]
      %v289 = vld [vmem:[%s257 + $0xc] sm:$0xf]
      %v290 = vld [vmem:[%s257 + $0x10] sm:$0xf]
      %v291 = vld [vmem:[%s257 + $0x14] sm:$0x1]
      %v292 = vld [vmem:[%s257 + $0x18] sm:$0xf]
      %v293 = vld [vmem:[%s257 + $0x1c] sm:$0xf]
      %v294 = vld [vmem:[%s257 + $0x20] sm:$0x1]
      %v295 = vld [vmem:[%s257 + $0x24] sm:$0xf]
      %v296 = vld [vmem:[%s257 + $0x28] sm:$0xf]
      %v297 = vld [vmem:[%s257 + $0x2c] sm:$0x1]
      %v298 = vld [vmem:[%s257 + $0x30] sm:$0xf]
      %v299 = vld [vmem:[%s257 + $0x34] sm:$0xf]
      %v300 = vld [vmem:[%s257 + $0x38] sm:$0x1]
      %v301 = vld [vmem:[%s257 + $0x3c] sm:$0xf]
      %v302 = vld [vmem:[%s257 + $0x40] sm:$0xf]
      %v303 = vld [vmem:[%s257 + $0x44] sm:$0x1]
      %v304 = vld [vmem:[%s257 + $0x48] sm:$0xf]
      %v305 = vld [vmem:[%s257 + $0x4c] sm:$0xf]
      %v306 = vld [vmem:[%s257 + $0x50] sm:$0x1]
      %v307 = vld [vmem:[%s257 + $0x54] sm:$0xf]
      %v308 = vld [vmem:[%s257 + $0x58] sm:$0xf]
      %v309 = vld [vmem:[%s257 + $0x5c] sm:$0x1]
      %v310 = vld [vmem:[%s257 + $0x60] sm:$0xf]
      %v311 = vld [vmem:[%s257 + $0x64] sm:$0xf]
      %v312 = vld [vmem:[%s257 + $0x68] sm:$0x1]
      %v313 = vld [vmem:[%s257 + $0x6c] sm:$0xf]
      %v314 = vld [vmem:[%s257 + $0x70] sm:$0xf]
      %v315 = vld [vmem:[%s257 + $0x74] sm:$0x1]
      %v316 = vld [vmem:[%s257 + $0x78] sm:$0xf]
      %v317 = vld [vmem:[%s257 + $0x7c] sm:$0xf]
      %v318 = vld [vmem:[%s257 + $0x80] sm:$0x1]
      %v319 = vld [vmem:[%s257 + $0x84] sm:$0xf]
      %v320 = vld [vmem:[%s257 + $0x88] sm:$0xf]
      %v321 = vld [vmem:[%s257 + $0x8c] sm:$0x1]
      %v322 = vld [vmem:[%s257 + $0x90] sm:$0xf]
      %v323 = vld [vmem:[%s257 + $0x94] sm:$0xf]
      %v324 = vld [vmem:[%s257 + $0x98] sm:$0x1]
      %v325 = vld [vmem:[%s257 + $0x9c] sm:$0xf]
      %v326 = vld [vmem:[%s257 + $0xa0] sm:$0xf]
      %v327 = vld [vmem:[%s257 + $0xa4] sm:$0x1]
      %v328 = vld [vmem:[%s257 + $0xa8] sm:$0xf]
      %v329 = vld [vmem:[%s257 + $0xac] sm:$0xf]
      %v330 = vld [vmem:[%s257 + $0xb0] sm:$0x1]
      %v331 = vld [vmem:[%s257 + $0xb4] sm:$0xf]
      %v332 = vld [vmem:[%s257 + $0xb8] sm:$0xf]
      %v333 = vld [vmem:[%s257 + $0xbc] sm:$0x1]
      %v366 = vunpack.c.l.b16 %v286
      %v367 = vunpack.c.l.b16 %v287
      %v368 = vunpack.c.l.b16 %v289
      %v369 = vunpack.c.l.b16 %v290
      %v370 = vunpack.c.l.b16 %v292
      %v371 = vunpack.c.l.b16 %v293
      %v372 = vunpack.c.l.b16 %v295
      %v373 = vunpack.c.l.b16 %v296
      %v374 = vunpack.c.l.b16 %v298
      %v375 = vunpack.c.l.b16 %v299
      %v376 = vunpack.c.l.b16 %v301
      %v377 = vunpack.c.l.b16 %v302
      %v378 = vunpack.c.l.b16 %v304
      %v379 = vunpack.c.l.b16 %v305
      %v380 = vunpack.c.l.b16 %v307
      %v381 = vunpack.c.l.b16 %v308
      %v382 = vunpack.c.l.b16 %v310
      %v383 = vunpack.c.l.b16 %v311
      %v384 = vunpack.c.l.b16 %v313
      %v385 = vunpack.c.l.b16 %v314
      %v386 = vunpack.c.l.b16 %v316
      %v387 = vunpack.c.l.b16 %v317
      %v388 = vunpack.c.l.b16 %v319
      %v389 = vunpack.c.l.b16 %v320
      %v390 = vunpack.c.l.b16 %v322
      %v391 = vunpack.c.l.b16 %v323
      %v392 = vunpack.c.l.b16 %v325
      %v393 = vunpack.c.l.b16 %v326
      %v394 = vunpack.c.l.b16 %v328
      %v395 = vunpack.c.l.b16 %v329
      %v396 = vunpack.c.l.b16 %v331
      %v397 = vunpack.c.l.b16 %v332
      %v398 = vpack.c.b16 %v367, %v366
      %v399 = vpack.c.b16 %v369, %v368
      %v400 = vpack.c.b16 %v371, %v370
      %v401 = vpack.c.b16 %v373, %v372
      %v402 = vpack.c.b16 %v375, %v374
      %v403 = vpack.c.b16 %v377, %v376
      %v404 = vpack.c.b16 %v379, %v378
      %v405 = vpack.c.b16 %v381, %v380
      %v406 = vpack.c.b16 %v383, %v382
      %v407 = vpack.c.b16 %v385, %v384
      %v408 = vpack.c.b16 %v387, %v386
      %v409 = vpack.c.b16 %v389, %v388
      %v410 = vpack.c.b16 %v391, %v390
      %v411 = vpack.c.b16 %v393, %v392
      %v412 = vpack.c.b16 %v395, %v394
      %v413 = vpack.c.b16 %v397, %v396
      %v430 = vunpack.c.l.b16 %v288
      %v431 = vunpack.c.l.b16 %v291
      %v432 = vunpack.c.l.b16 %v294
      %v433 = vunpack.c.l.b16 %v297
      %v434 = vunpack.c.l.b16 %v300
      %v435 = vunpack.c.l.b16 %v303
      %v436 = vunpack.c.l.b16 %v306
      %v437 = vunpack.c.l.b16 %v309
      %v438 = vunpack.c.l.b16 %v312
      %v439 = vunpack.c.l.b16 %v315
      %v440 = vunpack.c.l.b16 %v318
      %v441 = vunpack.c.l.b16 %v321
      %v442 = vunpack.c.l.b16 %v324
      %v443 = vunpack.c.l.b16 %v327
      %v444 = vunpack.c.l.b16 %v330
      %v445 = vunpack.c.l.b16 %v333
      %v446 = vpack.c.b16 %v430, %v430
      %v447 = vpack.c.b16 %v431, %v431
      %v448 = vpack.c.b16 %v432, %v432
      %v449 = vpack.c.b16 %v433, %v433
      %v450 = vpack.c.b16 %v434, %v434
      %v451 = vpack.c.b16 %v435, %v435
      %v452 = vpack.c.b16 %v436, %v436
      %v453 = vpack.c.b16 %v437, %v437
      %v454 = vpack.c.b16 %v438, %v438
      %v455 = vpack.c.b16 %v439, %v439
      %v456 = vpack.c.b16 %v440, %v440
      %v457 = vpack.c.b16 %v441, %v441
      %v458 = vpack.c.b16 %v442, %v442
      %v459 = vpack.c.b16 %v443, %v443
      %v460 = vpack.c.b16 %v444, %v444
      %v461 = vpack.c.b16 %v445, %v445
      %vm462 = vsmask.f32 7424
      %v464 = vshrl.u32 %v398, 16
      %v466 = vshll.u32 %v398, 16
      %v468 = vrot.slane %v466, 1
      %v469 = vor.u32 %v464, %v468
      %v471 = vshll.u32 %v446, 16
      %v473 = vrot.slane %v471, 1
      %v474 = vsel %vm462, %v469, %v473
      %v476 = vshrl.u32 %v399, 16
      %v478 = vshll.u32 %v399, 16
      %v480 = vrot.slane %v478, 1
      %v481 = vor.u32 %v476, %v480
      %v483 = vshll.u32 %v447, 16
      %v485 = vrot.slane %v483, 1
      %v486 = vsel %vm462, %v481, %v485
      %v488 = vshrl.u32 %v400, 16
      %v490 = vshll.u32 %v400, 16
      %v492 = vrot.slane %v490, 1
      %v493 = vor.u32 %v488, %v492
      %v495 = vshll.u32 %v448, 16
      %v497 = vrot.slane %v495, 1
      %v498 = vsel %vm462, %v493, %v497
      %v500 = vshrl.u32 %v401, 16
      %v502 = vshll.u32 %v401, 16
      %v504 = vrot.slane %v502, 1
      %v505 = vor.u32 %v500, %v504
      %v507 = vshll.u32 %v449, 16
      %v509 = vrot.slane %v507, 1
      %v510 = vsel %vm462, %v505, %v509
      %v512 = vshrl.u32 %v402, 16
      %v514 = vshll.u32 %v402, 16
      %v516 = vrot.slane %v514, 1
      %v517 = vor.u32 %v512, %v516
      %v519 = vshll.u32 %v450, 16
      %v521 = vrot.slane %v519, 1
      %v522 = vsel %vm462, %v517, %v521
      %v524 = vshrl.u32 %v403, 16
      %v526 = vshll.u32 %v403, 16
      %v528 = vrot.slane %v526, 1
      %v529 = vor.u32 %v524, %v528
      %v531 = vshll.u32 %v451, 16
      %v533 = vrot.slane %v531, 1
      %v534 = vsel %vm462, %v529, %v533
      %v536 = vshrl.u32 %v404, 16
      %v538 = vshll.u32 %v404, 16
      %v540 = vrot.slane %v538, 1
      %v541 = vor.u32 %v536, %v540
      %v543 = vshll.u32 %v452, 16
      %v545 = vrot.slane %v543, 1
      %v546 = vsel %vm462, %v541, %v545
      %v548 = vshrl.u32 %v405, 16
      %v550 = vshll.u32 %v405, 16
      %v552 = vrot.slane %v550, 1
      %v553 = vor.u32 %v548, %v552
      %v555 = vshll.u32 %v453, 16
      %v557 = vrot.slane %v555, 1
      %v558 = vsel %vm462, %v553, %v557
      %v560 = vshrl.u32 %v406, 16
      %v562 = vshll.u32 %v406, 16
      %v564 = vrot.slane %v562, 1
      %v565 = vor.u32 %v560, %v564
      %v567 = vshll.u32 %v454, 16
      %v569 = vrot.slane %v567, 1
      %v570 = vsel %vm462, %v565, %v569
      %v572 = vshrl.u32 %v407, 16
      %v574 = vshll.u32 %v407, 16
      %v576 = vrot.slane %v574, 1
      %v577 = vor.u32 %v572, %v576
      %v579 = vshll.u32 %v455, 16
      %v581 = vrot.slane %v579, 1
      %v582 = vsel %vm462, %v577, %v581
      %v584 = vshrl.u32 %v408, 16
      %v586 = vshll.u32 %v408, 16
      %v588 = vrot.slane %v586, 1
      %v589 = vor.u32 %v584, %v588
      %v591 = vshll.u32 %v456, 16
      %v593 = vrot.slane %v591, 1
      %v594 = vsel %vm462, %v589, %v593
      %v596 = vshrl.u32 %v409, 16
      %v598 = vshll.u32 %v409, 16
      %v600 = vrot.slane %v598, 1
      %v601 = vor.u32 %v596, %v600
      %v603 = vshll.u32 %v457, 16
      %v605 = vrot.slane %v603, 1
      %v606 = vsel %vm462, %v601, %v605
      %v608 = vshrl.u32 %v410, 16
      %v610 = vshll.u32 %v410, 16
      %v612 = vrot.slane %v610, 1
      %v613 = vor.u32 %v608, %v612
      %v615 = vshll.u32 %v458, 16
      %v617 = vrot.slane %v615, 1
      %v618 = vsel %vm462, %v613, %v617
      %v620 = vshrl.u32 %v411, 16
      %v622 = vshll.u32 %v411, 16
      %v624 = vrot.slane %v622, 1
      %v625 = vor.u32 %v620, %v624
      %v627 = vshll.u32 %v459, 16
      %v629 = vrot.slane %v627, 1
      %v630 = vsel %vm462, %v625, %v629
      %v632 = vshrl.u32 %v412, 16
      %v634 = vshll.u32 %v412, 16
      %v636 = vrot.slane %v634, 1
      %v637 = vor.u32 %v632, %v636
      %v639 = vshll.u32 %v460, 16
      %v641 = vrot.slane %v639, 1
      %v642 = vsel %vm462, %v637, %v641
      %v644 = vshrl.u32 %v413, 16
      %v646 = vshll.u32 %v413, 16
      %v648 = vrot.slane %v646, 1
      %v649 = vor.u32 %v644, %v648
      %v651 = vshll.u32 %v461, 16
      %v653 = vrot.slane %v651, 1
      %v654 = vsel %vm462, %v649, %v653
      %655 = vrot.lane.b32.xlu0 %v474, 4
      %v656 = vpop.permute.xlu0 %655
      %657 = vrot.lane.b32.xlu0 %v486, 4
      %v658 = vpop.permute.xlu0 %657
      %659 = vrot.lane.b32.xlu0 %v498, 4
      %v660 = vpop.permute.xlu0 %659
      %661 = vrot.lane.b32.xlu0 %v510, 4
      %v662 = vpop.permute.xlu0 %661
      %663 = vrot.lane.b32.xlu0 %v522, 4
      %v664 = vpop.permute.xlu0 %663
      %665 = vrot.lane.b32.xlu0 %v534, 4
      %v666 = vpop.permute.xlu0 %665
      %667 = vrot.lane.b32.xlu0 %v546, 4
      %v668 = vpop.permute.xlu0 %667
      %669 = vrot.lane.b32.xlu0 %v558, 4
      %v670 = vpop.permute.xlu0 %669
      %671 = vrot.lane.b32.xlu0 %v570, 4
      %v672 = vpop.permute.xlu0 %671
      %673 = vrot.lane.b32.xlu0 %v582, 4
      %v674 = vpop.permute.xlu0 %673
      %675 = vrot.lane.b32.xlu0 %v594, 4
      %v676 = vpop.permute.xlu0 %675
      %677 = vrot.lane.b32.xlu0 %v606, 4
      %v678 = vpop.permute.xlu0 %677
      %679 = vrot.lane.b32.xlu0 %v618, 4
      %v680 = vpop.permute.xlu0 %679
      %681 = vrot.lane.b32.xlu0 %v630, 4
      %v682 = vpop.permute.xlu0 %681
      %683 = vrot.lane.b32.xlu0 %v642, 4
      %v684 = vpop.permute.xlu0 %683
      %685 = vrot.lane.b32.xlu0 %v654, 4
      %v686 = vpop.permute.xlu0 %685
      %vm687 = vcmask 1046528
      %v688 = vrot.slane %v398, 1
      %v689 = vrot.slane %v446, 1
      %v690 = vsel %vm687, %v688, %v689
      %v691 = vrot.slane %v399, 1
      %v692 = vrot.slane %v447, 1
      %v693 = vsel %vm687, %v691, %v692
      %v694 = vrot.slane %v400, 1
      %v695 = vrot.slane %v448, 1
      %v696 = vsel %vm687, %v694, %v695
      %v697 = vrot.slane %v401, 1
      %v698 = vrot.slane %v449, 1
      %v699 = vsel %vm687, %v697, %v698
      %v700 = vrot.slane %v402, 1
      %v701 = vrot.slane %v450, 1
      %v702 = vsel %vm687, %v700, %v701
      %v703 = vrot.slane %v403, 1
      %v704 = vrot.slane %v451, 1
      %v705 = vsel %vm687, %v703, %v704
      %v706 = vrot.slane %v404, 1
      %v707 = vrot.slane %v452, 1
      %v708 = vsel %vm687, %v706, %v707
      %v709 = vrot.slane %v405, 1
      %v710 = vrot.slane %v453, 1
      %v711 = vsel %vm687, %v709, %v710
      %v712 = vrot.slane %v406, 1
      %v713 = vrot.slane %v454, 1
      %v714 = vsel %vm687, %v712, %v713
      %v715 = vrot.slane %v407, 1
      %v716 = vrot.slane %v455, 1
      %v717 = vsel %vm687, %v715, %v716
      %v718 = vrot.slane %v408, 1
      %v719 = vrot.slane %v456, 1
      %v720 = vsel %vm687, %v718, %v719
      %v721 = vrot.slane %v409, 1
      %v722 = vrot.slane %v457, 1
      %v723 = vsel %vm687, %v721, %v722
      %v724 = vrot.slane %v410, 1
      %v725 = vrot.slane %v458, 1
      %v726 = vsel %vm687, %v724, %v725
      %v727 = vrot.slane %v411, 1
      %v728 = vrot.slane %v459, 1
      %v729 = vsel %vm687, %v727, %v728
      %v730 = vrot.slane %v412, 1
      %v731 = vrot.slane %v460, 1
      %v732 = vsel %vm687, %v730, %v731
      %v733 = vrot.slane %v413, 1
      %v734 = vrot.slane %v461, 1
      %v735 = vsel %vm687, %v733, %v734
      %736 = vrot.lane.b32.xlu0 %v690, 8
      %v737 = vpop.permute.xlu0 %736
      %738 = vrot.lane.b32.xlu0 %v693, 8
      %v739 = vpop.permute.xlu0 %738
      %740 = vrot.lane.b32.xlu0 %v696, 8
      %v741 = vpop.permute.xlu0 %740
      %742 = vrot.lane.b32.xlu0 %v699, 8
      %v743 = vpop.permute.xlu0 %742
      %744 = vrot.lane.b32.xlu0 %v702, 8
      %v745 = vpop.permute.xlu0 %744
      %746 = vrot.lane.b32.xlu0 %v705, 8
      %v747 = vpop.permute.xlu0 %746
      %748 = vrot.lane.b32.xlu0 %v708, 8
      %v749 = vpop.permute.xlu0 %748
      %750 = vrot.lane.b32.xlu0 %v711, 8
      %v751 = vpop.permute.xlu0 %750
      %752 = vrot.lane.b32.xlu0 %v714, 8
      %v753 = vpop.permute.xlu0 %752
      %754 = vrot.lane.b32.xlu0 %v717, 8
      %v755 = vpop.permute.xlu0 %754
      %756 = vrot.lane.b32.xlu0 %v720, 8
      %v757 = vpop.permute.xlu0 %756
      %758 = vrot.lane.b32.xlu0 %v723, 8
      %v759 = vpop.permute.xlu0 %758
      %760 = vrot.lane.b32.xlu0 %v726, 8
      %v761 = vpop.permute.xlu0 %760
      %762 = vrot.lane.b32.xlu0 %v729, 8
      %v763 = vpop.permute.xlu0 %762
      %764 = vrot.lane.b32.xlu0 %v732, 8
      %v765 = vpop.permute.xlu0 %764
      %766 = vrot.lane.b32.xlu0 %v735, 8
      %v767 = vpop.permute.xlu0 %766
      %vm768 = vcmask 31744
      %v770 = vsel %vm768, %v398, %v656
      %v772 = vsel %vm768, %v399, %v658
      %v774 = vsel %vm768, %v400, %v660
      %v776 = vsel %vm768, %v401, %v662
      %v778 = vsel %vm768, %v402, %v664
      %v780 = vsel %vm768, %v403, %v666
      %v782 = vsel %vm768, %v404, %v668
      %v784 = vsel %vm768, %v405, %v670
      %v786 = vsel %vm768, %v406, %v672
      %v788 = vsel %vm768, %v407, %v674
      %v790 = vsel %vm768, %v408, %v676
      %v792 = vsel %vm768, %v409, %v678
      %v794 = vsel %vm768, %v410, %v680
      %v796 = vsel %vm768, %v411, %v682
      %v798 = vsel %vm768, %v412, %v684
      %v800 = vsel %vm768, %v413, %v686
      %vm801 = vcmask 64512
      %v803 = vsel %vm801, %v770, %v737
      %v805 = vsel %vm801, %v772, %v739
      %v807 = vsel %vm801, %v774, %v741
      %v809 = vsel %vm801, %v776, %v743
      %v811 = vsel %vm801, %v778, %v745
      %v813 = vsel %vm801, %v780, %v747
      %v815 = vsel %vm801, %v782, %v749
      %v817 = vsel %vm801, %v784, %v751
      %v819 = vsel %vm801, %v786, %v753
      %v821 = vsel %vm801, %v788, %v755
      %v823 = vsel %vm801, %v790, %v757
      %v825 = vsel %vm801, %v792, %v759
      %v827 = vsel %vm801, %v794, %v761
      %v829 = vsel %vm801, %v796, %v763
      %v831 = vsel %vm801, %v798, %v765
      %v833 = vsel %vm801, %v800, %v767
      %v834 = vld [vmem:[%s2] sm:$0xf]
      %s835 = scalar_lea.vmem %s257, 12
      %v836 = vld [vmem:[%s835] sm:$0xf]
      %v837 = vld [vmem:[%s835 + $0x4] sm:$0xf]
      %v838 = vld [vmem:[%s835 + $0x8] sm:$0x1]
      %v839 = vld [vmem:[%s835 + $0xc] sm:$0xf]
      %v840 = vld [vmem:[%s835 + $0x10] sm:$0xf]
      %v841 = vld [vmem:[%s835 + $0x14] sm:$0x1]
      %v842 = vld [vmem:[%s835 + $0x18] sm:$0xf]
      %v843 = vld [vmem:[%s835 + $0x1c] sm:$0xf]
      %v844 = vld [vmem:[%s835 + $0x20] sm:$0x1]
      %v845 = vld [vmem:[%s835 + $0x24] sm:$0xf]
      %v846 = vld [vmem:[%s835 + $0x28] sm:$0xf]
      %v847 = vld [vmem:[%s835 + $0x2c] sm:$0x1]
      %v848 = vld [vmem:[%s835 + $0x30] sm:$0xf]
      %v849 = vld [vmem:[%s835 + $0x34] sm:$0xf]
      %v850 = vld [vmem:[%s835 + $0x38] sm:$0x1]
      %v851 = vld [vmem:[%s835 + $0x3c] sm:$0xf]
      %v852 = vld [vmem:[%s835 + $0x40] sm:$0xf]
      %v853 = vld [vmem:[%s835 + $0x44] sm:$0x1]
      %v854 = vld [vmem:[%s835 + $0x48] sm:$0xf]
      %v855 = vld [vmem:[%s835 + $0x4c] sm:$0xf]
      %v856 = vld [vmem:[%s835 + $0x50] sm:$0x1]
      %v857 = vld [vmem:[%s835 + $0x54] sm:$0xf]
      %v858 = vld [vmem:[%s835 + $0x58] sm:$0xf]
      %v859 = vld [vmem:[%s835 + $0x5c] sm:$0x1]
      %v860 = vld [vmem:[%s835 + $0x60] sm:$0xf]
      %v861 = vld [vmem:[%s835 + $0x64] sm:$0xf]
      %v862 = vld [vmem:[%s835 + $0x68] sm:$0x1]
      %v863 = vld [vmem:[%s835 + $0x6c] sm:$0xf]
      %v864 = vld [vmem:[%s835 + $0x70] sm:$0xf]
      %v865 = vld [vmem:[%s835 + $0x74] sm:$0x1]
      %v866 = vld [vmem:[%s835 + $0x78] sm:$0xf]
      %v867 = vld [vmem:[%s835 + $0x7c] sm:$0xf]
      %v868 = vld [vmem:[%s835 + $0x80] sm:$0x1]
      %v869 = vld [vmem:[%s835 + $0x84] sm:$0xf]
      %v870 = vld [vmem:[%s835 + $0x88] sm:$0xf]
      %v871 = vld [vmem:[%s835 + $0x8c] sm:$0x1]
      %v872 = vld [vmem:[%s835 + $0x90] sm:$0xf]
      %v873 = vld [vmem:[%s835 + $0x94] sm:$0xf]
      %v874 = vld [vmem:[%s835 + $0x98] sm:$0x1]
      %v875 = vld [vmem:[%s835 + $0x9c] sm:$0xf]
      %v876 = vld [vmem:[%s835 + $0xa0] sm:$0xf]
      %v877 = vld [vmem:[%s835 + $0xa4] sm:$0x1]
      %v878 = vld [vmem:[%s835 + $0xa8] sm:$0xf]
      %v879 = vld [vmem:[%s835 + $0xac] sm:$0xf]
      %v880 = vld [vmem:[%s835 + $0xb0] sm:$0x1]
      %v881 = vld [vmem:[%s275] sm:$0xf]
      %v882 = vld [vmem:[%s275 + $0x4] sm:$0xf]
      %v883 = vld [vmem:[%s275 + $0x8] sm:$0x1]
      %v916 = vunpack.c.l.b16 %v836
      %v917 = vunpack.c.l.b16 %v837
      %v918 = vunpack.c.l.b16 %v839
      %v919 = vunpack.c.l.b16 %v840
      %v920 = vunpack.c.l.b16 %v842
      %v921 = vunpack.c.l.b16 %v843
      %v922 = vunpack.c.l.b16 %v845
      %v923 = vunpack.c.l.b16 %v846
      %v924 = vunpack.c.l.b16 %v848
      %v925 = vunpack.c.l.b16 %v849
      %v926 = vunpack.c.l.b16 %v851
      %v927 = vunpack.c.l.b16 %v852
      %v928 = vunpack.c.l.b16 %v854
      %v929 = vunpack.c.l.b16 %v855
      %v930 = vunpack.c.l.b16 %v857
      %v931 = vunpack.c.l.b16 %v858
      %v932 = vunpack.c.l.b16 %v860
      %v933 = vunpack.c.l.b16 %v861
      %v934 = vunpack.c.l.b16 %v863
      %v935 = vunpack.c.l.b16 %v864
      %v936 = vunpack.c.l.b16 %v866
      %v937 = vunpack.c.l.b16 %v867
      %v938 = vunpack.c.l.b16 %v869
      %v939 = vunpack.c.l.b16 %v870
      %v940 = vunpack.c.l.b16 %v872
      %v941 = vunpack.c.l.b16 %v873
      %v942 = vunpack.c.l.b16 %v875
      %v943 = vunpack.c.l.b16 %v876
      %v944 = vunpack.c.l.b16 %v878
      %v945 = vunpack.c.l.b16 %v879
      %v946 = vunpack.c.l.b16 %v881
      %v947 = vunpack.c.l.b16 %v882
      %v948 = vpack.c.b16 %v917, %v916
      %v949 = vpack.c.b16 %v919, %v918
      %v950 = vpack.c.b16 %v921, %v920
      %v951 = vpack.c.b16 %v923, %v922
      %v952 = vpack.c.b16 %v925, %v924
      %v953 = vpack.c.b16 %v927, %v926
      %v954 = vpack.c.b16 %v929, %v928
      %v955 = vpack.c.b16 %v931, %v930
      %v956 = vpack.c.b16 %v933, %v932
      %v957 = vpack.c.b16 %v935, %v934
      %v958 = vpack.c.b16 %v937, %v936
      %v959 = vpack.c.b16 %v939, %v938
      %v960 = vpack.c.b16 %v941, %v940
      %v961 = vpack.c.b16 %v943, %v942
      %v962 = vpack.c.b16 %v945, %v944
      %v963 = vpack.c.b16 %v947, %v946
      %v980 = vunpack.c.l.b16 %v838
      %v981 = vunpack.c.l.b16 %v841
      %v982 = vunpack.c.l.b16 %v844
      %v983 = vunpack.c.l.b16 %v847
      %v984 = vunpack.c.l.b16 %v850
      %v985 = vunpack.c.l.b16 %v853
      %v986 = vunpack.c.l.b16 %v856
      %v987 = vunpack.c.l.b16 %v859
      %v988 = vunpack.c.l.b16 %v862
      %v989 = vunpack.c.l.b16 %v865
      %v990 = vunpack.c.l.b16 %v868
      %v991 = vunpack.c.l.b16 %v871
      %v992 = vunpack.c.l.b16 %v874
      %v993 = vunpack.c.l.b16 %v877
      %v994 = vunpack.c.l.b16 %v880
      %v995 = vunpack.c.l.b16 %v883
      %v996 = vpack.c.b16 %v980, %v980
      %v997 = vpack.c.b16 %v981, %v981
      %v998 = vpack.c.b16 %v982, %v982
      %v999 = vpack.c.b16 %v983, %v983
      %v1000 = vpack.c.b16 %v984, %v984
      %v1001 = vpack.c.b16 %v985, %v985
      %v1002 = vpack.c.b16 %v986, %v986
      %v1003 = vpack.c.b16 %v987, %v987
      %v1004 = vpack.c.b16 %v988, %v988
      %v1005 = vpack.c.b16 %v989, %v989
      %v1006 = vpack.c.b16 %v990, %v990
      %v1007 = vpack.c.b16 %v991, %v991
      %v1008 = vpack.c.b16 %v992, %v992
      %v1009 = vpack.c.b16 %v993, %v993
      %v1010 = vpack.c.b16 %v994, %v994
      %v1011 = vpack.c.b16 %v995, %v995
      %v1013 = vshrl.u32 %v948, 16
      %v1015 = vshll.u32 %v948, 16
      %v1017 = vrot.slane %v1015, 1
      %v1018 = vor.u32 %v1013, %v1017
      %v1020 = vshll.u32 %v996, 16
      %v1022 = vrot.slane %v1020, 1
      %v1023 = vsel %vm462, %v1018, %v1022
      %v1025 = vshrl.u32 %v949, 16
      %v1027 = vshll.u32 %v949, 16
      %v1029 = vrot.slane %v1027, 1
      %v1030 = vor.u32 %v1025, %v1029
      %v1032 = vshll.u32 %v997, 16
      %v1034 = vrot.slane %v1032, 1
      %v1035 = vsel %vm462, %v1030, %v1034
      %v1037 = vshrl.u32 %v950, 16
      %v1039 = vshll.u32 %v950, 16
      %v1041 = vrot.slane %v1039, 1
      %v1042 = vor.u32 %v1037, %v1041
      %v1044 = vshll.u32 %v998, 16
      %v1046 = vrot.slane %v1044, 1
      %v1047 = vsel %vm462, %v1042, %v1046
      %v1049 = vshrl.u32 %v951, 16
      %v1051 = vshll.u32 %v951, 16
      %v1053 = vrot.slane %v1051, 1
      %v1054 = vor.u32 %v1049, %v1053
      %v1056 = vshll.u32 %v999, 16
      %v1058 = vrot.slane %v1056, 1
      %v1059 = vsel %vm462, %v1054, %v1058
      %v1061 = vshrl.u32 %v952, 16
      %v1063 = vshll.u32 %v952, 16
      %v1065 = vrot.slane %v1063, 1
      %v1066 = vor.u32 %v1061, %v1065
      %v1068 = vshll.u32 %v1000, 16
      %v1070 = vrot.slane %v1068, 1
      %v1071 = vsel %vm462, %v1066, %v1070
      %v1073 = vshrl.u32 %v953, 16
      %v1075 = vshll.u32 %v953, 16
      %v1077 = vrot.slane %v1075, 1
      %v1078 = vor.u32 %v1073, %v1077
      %v1080 = vshll.u32 %v1001, 16
      %v1082 = vrot.slane %v1080, 1
      %v1083 = vsel %vm462, %v1078, %v1082
      %v1085 = vshrl.u32 %v954, 16
      %v1087 = vshll.u32 %v954, 16
      %v1089 = vrot.slane %v1087, 1
      %v1090 = vor.u32 %v1085, %v1089
      %v1092 = vshll.u32 %v1002, 16
      %v1094 = vrot.slane %v1092, 1
      %v1095 = vsel %vm462, %v1090, %v1094
      %v1097 = vshrl.u32 %v955, 16
      %v1099 = vshll.u32 %v955, 16
      %v1101 = vrot.slane %v1099, 1
      %v1102 = vor.u32 %v1097, %v1101
      %v1104 = vshll.u32 %v1003, 16
      %v1106 = vrot.slane %v1104, 1
      %v1107 = vsel %vm462, %v1102, %v1106
      %v1109 = vshrl.u32 %v956, 16
      %v1111 = vshll.u32 %v956, 16
      %v1113 = vrot.slane %v1111, 1
      %v1114 = vor.u32 %v1109, %v1113
      %v1116 = vshll.u32 %v1004, 16
      %v1118 = vrot.slane %v1116, 1
      %v1119 = vsel %vm462, %v1114, %v1118
      %v1121 = vshrl.u32 %v957, 16
      %v1123 = vshll.u32 %v957, 16
      %v1125 = vrot.slane %v1123, 1
      %v1126 = vor.u32 %v1121, %v1125
      %v1128 = vshll.u32 %v1005, 16
      %v1130 = vrot.slane %v1128, 1
      %v1131 = vsel %vm462, %v1126, %v1130
      %v1133 = vshrl.u32 %v958, 16
      %v1135 = vshll.u32 %v958, 16
      %v1137 = vrot.slane %v1135, 1
      %v1138 = vor.u32 %v1133, %v1137
      %v1140 = vshll.u32 %v1006, 16
      %v1142 = vrot.slane %v1140, 1
      %v1143 = vsel %vm462, %v1138, %v1142
      %v1145 = vshrl.u32 %v959, 16
      %v1147 = vshll.u32 %v959, 16
      %v1149 = vrot.slane %v1147, 1
      %v1150 = vor.u32 %v1145, %v1149
      %v1152 = vshll.u32 %v1007, 16
      %v1154 = vrot.slane %v1152, 1
      %v1155 = vsel %vm462, %v1150, %v1154
      %v1157 = vshrl.u32 %v960, 16
      %v1159 = vshll.u32 %v960, 16
      %v1161 = vrot.slane %v1159, 1
      %v1162 = vor.u32 %v1157, %v1161
      %v1164 = vshll.u32 %v1008, 16
      %v1166 = vrot.slane %v1164, 1
      %v1167 = vsel %vm462, %v1162, %v1166
      %v1169 = vshrl.u32 %v961, 16
      %v1171 = vshll.u32 %v961, 16
      %v1173 = vrot.slane %v1171, 1
      %v1174 = vor.u32 %v1169, %v1173
      %v1176 = vshll.u32 %v1009, 16
      %v1178 = vrot.slane %v1176, 1
      %v1179 = vsel %vm462, %v1174, %v1178
      %v1181 = vshrl.u32 %v962, 16
      %v1183 = vshll.u32 %v962, 16
      %v1185 = vrot.slane %v1183, 1
      %v1186 = vor.u32 %v1181, %v1185
      %v1188 = vshll.u32 %v1010, 16
      %v1190 = vrot.slane %v1188, 1
      %v1191 = vsel %vm462, %v1186, %v1190
      %v1193 = vshrl.u32 %v963, 16
      %v1195 = vshll.u32 %v963, 16
      %v1197 = vrot.slane %v1195, 1
      %v1198 = vor.u32 %v1193, %v1197
      %v1200 = vshll.u32 %v1011, 16
      %v1202 = vrot.slane %v1200, 1
      %v1203 = vsel %vm462, %v1198, %v1202
      %1204 = vrot.lane.b32.xlu0 %v1023, 4
      %v1205 = vpop.permute.xlu0 %1204
      %1206 = vrot.lane.b32.xlu0 %v1035, 4
      %v1207 = vpop.permute.xlu0 %1206
      %1208 = vrot.lane.b32.xlu0 %v1047, 4
      %v1209 = vpop.permute.xlu0 %1208
      %1210 = vrot.lane.b32.xlu0 %v1059, 4
      %v1211 = vpop.permute.xlu0 %1210
      %1212 = vrot.lane.b32.xlu0 %v1071, 4
      %v1213 = vpop.permute.xlu0 %1212
      %1214 = vrot.lane.b32.xlu0 %v1083, 4
      %v1215 = vpop.permute.xlu0 %1214
      %1216 = vrot.lane.b32.xlu0 %v1095, 4
      %v1217 = vpop.permute.xlu0 %1216
      %1218 = vrot.lane.b32.xlu0 %v1107, 4
      %v1219 = vpop.permute.xlu0 %1218
      %1220 = vrot.lane.b32.xlu0 %v1119, 4
      %v1221 = vpop.permute.xlu0 %1220
      %1222 = vrot.lane.b32.xlu0 %v1131, 4
      %v1223 = vpop.permute.xlu0 %1222
      %1224 = vrot.lane.b32.xlu0 %v1143, 4
      %v1225 = vpop.permute.xlu0 %1224
      %1226 = vrot.lane.b32.xlu0 %v1155, 4
      %v1227 = vpop.permute.xlu0 %1226
      %1228 = vrot.lane.b32.xlu0 %v1167, 4
      %v1229 = vpop.permute.xlu0 %1228
      %1230 = vrot.lane.b32.xlu0 %v1179, 4
      %v1231 = vpop.permute.xlu0 %1230
      %1232 = vrot.lane.b32.xlu0 %v1191, 4
      %v1233 = vpop.permute.xlu0 %1232
      %1234 = vrot.lane.b32.xlu0 %v1203, 4
      %v1235 = vpop.permute.xlu0 %1234
      %v1236 = vrot.slane %v948, 1
      %v1237 = vrot.slane %v996, 1
      %v1238 = vsel %vm687, %v1236, %v1237
      %v1239 = vrot.slane %v949, 1
      %v1240 = vrot.slane %v997, 1
      %v1241 = vsel %vm687, %v1239, %v1240
      %v1242 = vrot.slane %v950, 1
      %v1243 = vrot.slane %v998, 1
      %v1244 = vsel %vm687, %v1242, %v1243
      %v1245 = vrot.slane %v951, 1
      %v1246 = vrot.slane %v999, 1
      %v1247 = vsel %vm687, %v1245, %v1246
      %v1248 = vrot.slane %v952, 1
      %v1249 = vrot.slane %v1000, 1
      %v1250 = vsel %vm687, %v1248, %v1249
      %v1251 = vrot.slane %v953, 1
      %v1252 = vrot.slane %v1001, 1
      %v1253 = vsel %vm687, %v1251, %v1252
      %v1254 = vrot.slane %v954, 1
      %v1255 = vrot.slane %v1002, 1
      %v1256 = vsel %vm687, %v1254, %v1255
      %v1257 = vrot.slane %v955, 1
      %v1258 = vrot.slane %v1003, 1
      %v1259 = vsel %vm687, %v1257, %v1258
      %v1260 = vrot.slane %v956, 1
      %v1261 = vrot.slane %v1004, 1
      %v1262 = vsel %vm687, %v1260, %v1261
      %v1263 = vrot.slane %v957, 1
      %v1264 = vrot.slane %v1005, 1
      %v1265 = vsel %vm687, %v1263, %v1264
      %v1266 = vrot.slane %v958, 1
      %v1267 = vrot.slane %v1006, 1
      %v1268 = vsel %vm687, %v1266, %v1267
      %v1269 = vrot.slane %v959, 1
      %v1270 = vrot.slane %v1007, 1
      %v1271 = vsel %vm687, %v1269, %v1270
      %v1272 = vrot.slane %v960, 1
      %v1273 = vrot.slane %v1008, 1
      %v1274 = vsel %vm687, %v1272, %v1273
      %v1275 = vrot.slane %v961, 1
      %v1276 = vrot.slane %v1009, 1
      %v1277 = vsel %vm687, %v1275, %v1276
      %v1278 = vrot.slane %v962, 1
      %v1279 = vrot.slane %v1010, 1
      %v1280 = vsel %vm687, %v1278, %v1279
      %v1281 = vrot.slane %v963, 1
      %v1282 = vrot.slane %v1011, 1
      %v1283 = vsel %vm687, %v1281, %v1282
      %1284 = vrot.lane.b32.xlu0 %v1238, 8
      %v1285 = vpop.permute.xlu0 %1284
      %1286 = vrot.lane.b32.xlu0 %v1241, 8
      %v1287 = vpop.permute.xlu0 %1286
      %1288 = vrot.lane.b32.xlu0 %v1244, 8
      %v1289 = vpop.permute.xlu0 %1288
      %1290 = vrot.lane.b32.xlu0 %v1247, 8
      %v1291 = vpop.permute.xlu0 %1290
      %1292 = vrot.lane.b32.xlu0 %v1250, 8
      %v1293 = vpop.permute.xlu0 %1292
      %1294 = vrot.lane.b32.xlu0 %v1253, 8
      %v1295 = vpop.permute.xlu0 %1294
      %1296 = vrot.lane.b32.xlu0 %v1256, 8
      %v1297 = vpop.permute.xlu0 %1296
      %1298 = vrot.lane.b32.xlu0 %v1259, 8
      %v1299 = vpop.permute.xlu0 %1298
      %1300 = vrot.lane.b32.xlu0 %v1262, 8
      %v1301 = vpop.permute.xlu0 %1300
      %1302 = vrot.lane.b32.xlu0 %v1265, 8
      %v1303 = vpop.permute.xlu0 %1302
      %1304 = vrot.lane.b32.xlu0 %v1268, 8
      %v1305 = vpop.permute.xlu0 %1304
      %1306 = vrot.lane.b32.xlu0 %v1271, 8
      %v1307 = vpop.permute.xlu0 %1306
      %1308 = vrot.lane.b32.xlu0 %v1274, 8
      %v1309 = vpop.permute.xlu0 %1308
      %1310 = vrot.lane.b32.xlu0 %v1277, 8
      %v1311 = vpop.permute.xlu0 %1310
      %1312 = vrot.lane.b32.xlu0 %v1280, 8
      %v1313 = vpop.permute.xlu0 %1312
      %1314 = vrot.lane.b32.xlu0 %v1283, 8
      %v1315 = vpop.permute.xlu0 %1314
      %v1317 = vsel %vm768, %v948, %v1205
      %v1319 = vsel %vm768, %v949, %v1207
      %v1321 = vsel %vm768, %v950, %v1209
      %v1323 = vsel %vm768, %v951, %v1211
      %v1325 = vsel %vm768, %v952, %v1213
      %v1327 = vsel %vm768, %v953, %v1215
      %v1329 = vsel %vm768, %v954, %v1217
      %v1331 = vsel %vm768, %v955, %v1219
      %v1333 = vsel %vm768, %v956, %v1221
      %v1335 = vsel %vm768, %v957, %v1223
      %v1337 = vsel %vm768, %v958, %v1225
      %v1339 = vsel %vm768, %v959, %v1227
      %v1341 = vsel %vm768, %v960, %v1229
      %v1343 = vsel %vm768, %v961, %v1231
      %v1345 = vsel %vm768, %v962, %v1233
      %v1347 = vsel %vm768, %v963, %v1235
      %v1349 = vsel %vm801, %v1317, %v1285
      %v1351 = vsel %vm801, %v1319, %v1287
      %v1353 = vsel %vm801, %v1321, %v1289
      %v1355 = vsel %vm801, %v1323, %v1291
      %v1357 = vsel %vm801, %v1325, %v1293
      %v1359 = vsel %vm801, %v1327, %v1295
      %v1361 = vsel %vm801, %v1329, %v1297
      %v1363 = vsel %vm801, %v1331, %v1299
      %v1365 = vsel %vm801, %v1333, %v1301
      %v1367 = vsel %vm801, %v1335, %v1303
      %v1369 = vsel %vm801, %v1337, %v1305
      %v1371 = vsel %vm801, %v1339, %v1307
      %v1373 = vsel %vm801, %v1341, %v1309
      %v1375 = vsel %vm801, %v1343, %v1311
      %v1377 = vsel %vm801, %v1345, %v1313
      %v1379 = vsel %vm801, %v1347, %v1315
      %v1381 = vunpack.c.l.b16 %v834
      %v1382 = vpack.c.b16 %v1381, %v1381
      %1383 = vrot.lane.b32.xlu0 %v1382, 116
      %v1384 = vpop.permute.xlu0 %1383
      %vm1385 = vcmask 97280
      %v1387 = vsel %vm1385, %v1384, 0
      %v1389 = vsel %vm1385, %v1349, 0
      %v1391 = vsel %vm1385, %v1351, 0
      %v1393 = vsel %vm1385, %v1353, 0
      %v1395 = vsel %vm1385, %v1355, 0
      %v1397 = vsel %vm1385, %v1357, 0
      %v1399 = vsel %vm1385, %v1359, 0
      %v1401 = vsel %vm1385, %v1361, 0
      %v1403 = vsel %vm1385, %v1363, 0
      %v1405 = vsel %vm1385, %v1365, 0
      %v1407 = vsel %vm1385, %v1367, 0
      %v1409 = vsel %vm1385, %v1369, 0
      %v1411 = vsel %vm1385, %v1371, 0
      %v1413 = vsel %vm1385, %v1373, 0
      %v1415 = vsel %vm1385, %v1375, 0
      %v1417 = vsel %vm1385, %v1377, 0
      %v1419 = vsel %vm1385, %v1379, 0
      %1421 = vmatpush.bf16.xpose.msra.mxu0 %v1403
      %1422 = vmatpush.bf16.xpose.msra.mxu0 %v1401
      %1423 = vmatpush.bf16.xpose.msra.mxu0 %v1399
      %1424 = vmatpush.bf16.xpose.msra.mxu0 %v1397
      %1425 = vmatpush.bf16.xpose.msra.mxu0 %v1395
      %1426 = vmatpush.bf16.xpose.msra.mxu0 %v1393
      %1427 = vmatpush.bf16.xpose.msra.mxu0 %v1391
      %1428 = vmatpush.bf16.xpose.msra.mxu0 %v1389
      %1429 = vmatmul.bf16.gmra.mxu0 %v1387
      %v1430 = vpop.f32.mrf.mxu0
      %v1431 = vadd.f32 0.0, %v1430
      %v1432 = vpop.f32.mrf.mxu0
      %1433 = vdwg.mxu0
      %1434 = vmatpush.bf16.xpose.msra.mxu0 %v1419
      %1435 = vmatpush.bf16.xpose.msra.mxu0 %v1417
      %1436 = vmatpush.bf16.xpose.msra.mxu0 %v1415
      %1437 = vmatpush.bf16.xpose.msra.mxu0 %v1413
      %1438 = vmatpush.bf16.xpose.msra.mxu0 %v1411
      %1439 = vmatpush.bf16.xpose.msra.mxu0 %v1409
      %1440 = vmatpush.bf16.xpose.msra.mxu0 %v1407
      %1441 = vmatpush.bf16.xpose.msra.mxu0 %v1405
      %1442 = vmatmul.bf16.gmra.mxu0 %v1387
      %v1443 = vpop.f32.mrf.mxu0
      %v1444 = vadd.f32 0.0, %v1443
      %v1445 = vpop.f32.mrf.mxu0
      %1446 = vdwg.mxu0
      %v1448 = vsel %vm1385, %v834, 0
      %v1450 = vsel %vm1385, %v803, 0
      %v1452 = vsel %vm1385, %v805, 0
      %v1454 = vsel %vm1385, %v807, 0
      %v1456 = vsel %vm1385, %v809, 0
      %v1458 = vsel %vm1385, %v811, 0
      %v1460 = vsel %vm1385, %v813, 0
      %v1462 = vsel %vm1385, %v815, 0
      %v1464 = vsel %vm1385, %v817, 0
      %v1466 = vsel %vm1385, %v819, 0
      %v1468 = vsel %vm1385, %v821, 0
      %v1470 = vsel %vm1385, %v823, 0
      %v1472 = vsel %vm1385, %v825, 0
      %v1474 = vsel %vm1385, %v827, 0
      %v1476 = vsel %vm1385, %v829, 0
      %v1478 = vsel %vm1385, %v831, 0
      %v1480 = vsel %vm1385, %v833, 0
      %1482 = vmatpush.bf16.xpose.msra.mxu0 %v1464
      %1483 = vmatpush.bf16.xpose.msra.mxu0 %v1462
      %1484 = vmatpush.bf16.xpose.msra.mxu0 %v1460
      %1485 = vmatpush.bf16.xpose.msra.mxu0 %v1458
      %1486 = vmatpush.bf16.xpose.msra.mxu0 %v1456
      %1487 = vmatpush.bf16.xpose.msra.mxu0 %v1454
      %1488 = vmatpush.bf16.xpose.msra.mxu0 %v1452
      %1489 = vmatpush.bf16.xpose.msra.mxu0 %v1450
      %1490 = vmatmul.bf16.gmra.mxu0 %v1448
      %v1491 = vpop.f32.mrf.mxu0
      %v1492 = vadd.f32 %v1431, %v1491
      %v1493 = vpop.f32.mrf.mxu0
      %1494 = vdwg.mxu0
      %1495 = vmatpush.bf16.xpose.msra.mxu0 %v1480
      %1496 = vmatpush.bf16.xpose.msra.mxu0 %v1478
      %1497 = vmatpush.bf16.xpose.msra.mxu0 %v1476
      %1498 = vmatpush.bf16.xpose.msra.mxu0 %v1474
      %1499 = vmatpush.bf16.xpose.msra.mxu0 %v1472
      %1500 = vmatpush.bf16.xpose.msra.mxu0 %v1470
      %1501 = vmatpush.bf16.xpose.msra.mxu0 %v1468
      %1502 = vmatpush.bf16.xpose.msra.mxu0 %v1466
      %1503 = vmatmul.bf16.gmra.mxu0 %v1448
      %v1504 = vpop.f32.mrf.mxu0
      %v1505 = vadd.f32 %v1444, %v1504
      %v1506 = vpop.f32.mrf.mxu0
      %1507 = vdwg.mxu0
      %s1508 = scalar_lea.vmem %s257, 24
      %v1509 = vld [vmem:[%s1508] sm:$0xf]
      %v1510 = vld [vmem:[%s1508 + $0x4] sm:$0xf]
      %v1511 = vld [vmem:[%s1508 + $0x8] sm:$0x1]
      %v1512 = vld [vmem:[%s1508 + $0xc] sm:$0xf]
      %v1513 = vld [vmem:[%s1508 + $0x10] sm:$0xf]
      %v1514 = vld [vmem:[%s1508 + $0x14] sm:$0x1]
      %v1515 = vld [vmem:[%s1508 + $0x18] sm:$0xf]
      %v1516 = vld [vmem:[%s1508 + $0x1c] sm:$0xf]
      %v1517 = vld [vmem:[%s1508 + $0x20] sm:$0x1]
      %v1518 = vld [vmem:[%s1508 + $0x24] sm:$0xf]
      %v1519 = vld [vmem:[%s1508 + $0x28] sm:$0xf]
      %v1520 = vld [vmem:[%s1508 + $0x2c] sm:$0x1]
      %v1521 = vld [vmem:[%s1508 + $0x30] sm:$0xf]
      %v1522 = vld [vmem:[%s1508 + $0x34] sm:$0xf]
      %v1523 = vld [vmem:[%s1508 + $0x38] sm:$0x1]
      %v1524 = vld [vmem:[%s1508 + $0x3c] sm:$0xf]
      %v1525 = vld [vmem:[%s1508 + $0x40] sm:$0xf]
      %v1526 = vld [vmem:[%s1508 + $0x44] sm:$0x1]
      %v1527 = vld [vmem:[%s1508 + $0x48] sm:$0xf]
      %v1528 = vld [vmem:[%s1508 + $0x4c] sm:$0xf]
      %v1529 = vld [vmem:[%s1508 + $0x50] sm:$0x1]
      %v1530 = vld [vmem:[%s1508 + $0x54] sm:$0xf]
      %v1531 = vld [vmem:[%s1508 + $0x58] sm:$0xf]
      %v1532 = vld [vmem:[%s1508 + $0x5c] sm:$0x1]
      %v1533 = vld [vmem:[%s1508 + $0x60] sm:$0xf]
      %v1534 = vld [vmem:[%s1508 + $0x64] sm:$0xf]
      %v1535 = vld [vmem:[%s1508 + $0x68] sm:$0x1]
      %v1536 = vld [vmem:[%s1508 + $0x6c] sm:$0xf]
      %v1537 = vld [vmem:[%s1508 + $0x70] sm:$0xf]
      %v1538 = vld [vmem:[%s1508 + $0x74] sm:$0x1]
      %v1539 = vld [vmem:[%s1508 + $0x78] sm:$0xf]
      %v1540 = vld [vmem:[%s1508 + $0x7c] sm:$0xf]
      %v1541 = vld [vmem:[%s1508 + $0x80] sm:$0x1]
      %v1542 = vld [vmem:[%s1508 + $0x84] sm:$0xf]
      %v1543 = vld [vmem:[%s1508 + $0x88] sm:$0xf]
      %v1544 = vld [vmem:[%s1508 + $0x8c] sm:$0x1]
      %v1545 = vld [vmem:[%s1508 + $0x90] sm:$0xf]
      %v1546 = vld [vmem:[%s1508 + $0x94] sm:$0xf]
      %v1547 = vld [vmem:[%s1508 + $0x98] sm:$0x1]
      %v1548 = vld [vmem:[%s1508 + $0x9c] sm:$0xf]
      %v1549 = vld [vmem:[%s1508 + $0xa0] sm:$0xf]
      %v1550 = vld [vmem:[%s1508 + $0xa4] sm:$0x1]
      %v1551 = vld [vmem:[%s275] sm:$0xf]
      %v1552 = vld [vmem:[%s275 + $0x4] sm:$0xf]
      %v1553 = vld [vmem:[%s275 + $0x8] sm:$0x1]
      %v1554 = vld [vmem:[%s275 + $0xc] sm:$0xf]
      %v1555 = vld [vmem:[%s275 + $0x10] sm:$0xf]
      %v1556 = vld [vmem:[%s275 + $0x14] sm:$0x1]
      %v1589 = vunpack.c.l.b16 %v1509
      %v1590 = vunpack.c.l.b16 %v1510
      %v1591 = vunpack.c.l.b16 %v1512
      %v1592 = vunpack.c.l.b16 %v1513
      %v1593 = vunpack.c.l.b16 %v1515
      %v1594 = vunpack.c.l.b16 %v1516
      %v1595 = vunpack.c.l.b16 %v1518
      %v1596 = vunpack.c.l.b16 %v1519
      %v1597 = vunpack.c.l.b16 %v1521
      %v1598 = vunpack.c.l.b16 %v1522
      %v1599 = vunpack.c.l.b16 %v1524
      %v1600 = vunpack.c.l.b16 %v1525
      %v1601 = vunpack.c.l.b16 %v1527
      %v1602 = vunpack.c.l.b16 %v1528
      %v1603 = vunpack.c.l.b16 %v1530
      %v1604 = vunpack.c.l.b16 %v1531
      %v1605 = vunpack.c.l.b16 %v1533
      %v1606 = vunpack.c.l.b16 %v1534
      %v1607 = vunpack.c.l.b16 %v1536
      %v1608 = vunpack.c.l.b16 %v1537
      %v1609 = vunpack.c.l.b16 %v1539
      %v1610 = vunpack.c.l.b16 %v1540
      %v1611 = vunpack.c.l.b16 %v1542
      %v1612 = vunpack.c.l.b16 %v1543
      %v1613 = vunpack.c.l.b16 %v1545
      %v1614 = vunpack.c.l.b16 %v1546
      %v1615 = vunpack.c.l.b16 %v1548
      %v1616 = vunpack.c.l.b16 %v1549
      %v1617 = vunpack.c.l.b16 %v1551
      %v1618 = vunpack.c.l.b16 %v1552
      %v1619 = vunpack.c.l.b16 %v1554
      %v1620 = vunpack.c.l.b16 %v1555
      %v1621 = vpack.c.b16 %v1590, %v1589
      %v1622 = vpack.c.b16 %v1592, %v1591
      %v1623 = vpack.c.b16 %v1594, %v1593
      %v1624 = vpack.c.b16 %v1596, %v1595
      %v1625 = vpack.c.b16 %v1598, %v1597
      %v1626 = vpack.c.b16 %v1600, %v1599
      %v1627 = vpack.c.b16 %v1602, %v1601
      %v1628 = vpack.c.b16 %v1604, %v1603
      %v1629 = vpack.c.b16 %v1606, %v1605
      %v1630 = vpack.c.b16 %v1608, %v1607
      %v1631 = vpack.c.b16 %v1610, %v1609
      %v1632 = vpack.c.b16 %v1612, %v1611
      %v1633 = vpack.c.b16 %v1614, %v1613
      %v1634 = vpack.c.b16 %v1616, %v1615
      %v1635 = vpack.c.b16 %v1618, %v1617
      %v1636 = vpack.c.b16 %v1620, %v1619
      %v1653 = vunpack.c.l.b16 %v1511
      %v1654 = vunpack.c.l.b16 %v1514
      %v1655 = vunpack.c.l.b16 %v1517
      %v1656 = vunpack.c.l.b16 %v1520
      %v1657 = vunpack.c.l.b16 %v1523
      %v1658 = vunpack.c.l.b16 %v1526
      %v1659 = vunpack.c.l.b16 %v1529
      %v1660 = vunpack.c.l.b16 %v1532
      %v1661 = vunpack.c.l.b16 %v1535
      %v1662 = vunpack.c.l.b16 %v1538
      %v1663 = vunpack.c.l.b16 %v1541
      %v1664 = vunpack.c.l.b16 %v1544
      %v1665 = vunpack.c.l.b16 %v1547
      %v1666 = vunpack.c.l.b16 %v1550
      %v1667 = vunpack.c.l.b16 %v1553
      %v1668 = vunpack.c.l.b16 %v1556
      %v1669 = vpack.c.b16 %v1653, %v1653
      %v1670 = vpack.c.b16 %v1654, %v1654
      %v1671 = vpack.c.b16 %v1655, %v1655
      %v1672 = vpack.c.b16 %v1656, %v1656
      %v1673 = vpack.c.b16 %v1657, %v1657
      %v1674 = vpack.c.b16 %v1658, %v1658
      %v1675 = vpack.c.b16 %v1659, %v1659
      %v1676 = vpack.c.b16 %v1660, %v1660
      %v1677 = vpack.c.b16 %v1661, %v1661
      %v1678 = vpack.c.b16 %v1662, %v1662
      %v1679 = vpack.c.b16 %v1663, %v1663
      %v1680 = vpack.c.b16 %v1664, %v1664
      %v1681 = vpack.c.b16 %v1665, %v1665
      %v1682 = vpack.c.b16 %v1666, %v1666
      %v1683 = vpack.c.b16 %v1667, %v1667
      %v1684 = vpack.c.b16 %v1668, %v1668
      %v1686 = vshrl.u32 %v1621, 16
      %v1688 = vshll.u32 %v1621, 16
      %v1690 = vrot.slane %v1688, 1
      %v1691 = vor.u32 %v1686, %v1690
      %v1693 = vshll.u32 %v1669, 16
      %v1695 = vrot.slane %v1693, 1
      %v1696 = vsel %vm462, %v1691, %v1695
      %v1698 = vshrl.u32 %v1622, 16
      %v1700 = vshll.u32 %v1622, 16
      %v1702 = vrot.slane %v1700, 1
      %v1703 = vor.u32 %v1698, %v1702
      %v1705 = vshll.u32 %v1670, 16
      %v1707 = vrot.slane %v1705, 1
      %v1708 = vsel %vm462, %v1703, %v1707
      %v1710 = vshrl.u32 %v1623, 16
      %v1712 = vshll.u32 %v1623, 16
      %v1714 = vrot.slane %v1712, 1
      %v1715 = vor.u32 %v1710, %v1714
      %v1717 = vshll.u32 %v1671, 16
      %v1719 = vrot.slane %v1717, 1
      %v1720 = vsel %vm462, %v1715, %v1719
      %v1722 = vshrl.u32 %v1624, 16
      %v1724 = vshll.u32 %v1624, 16
      %v1726 = vrot.slane %v1724, 1
      %v1727 = vor.u32 %v1722, %v1726
      %v1729 = vshll.u32 %v1672, 16
      %v1731 = vrot.slane %v1729, 1
      %v1732 = vsel %vm462, %v1727, %v1731
      %v1734 = vshrl.u32 %v1625, 16
      %v1736 = vshll.u32 %v1625, 16
      %v1738 = vrot.slane %v1736, 1
      %v1739 = vor.u32 %v1734, %v1738
      %v1741 = vshll.u32 %v1673, 16
      %v1743 = vrot.slane %v1741, 1
      %v1744 = vsel %vm462, %v1739, %v1743
      %v1746 = vshrl.u32 %v1626, 16
      %v1748 = vshll.u32 %v1626, 16
      %v1750 = vrot.slane %v1748, 1
      %v1751 = vor.u32 %v1746, %v1750
      %v1753 = vshll.u32 %v1674, 16
      %v1755 = vrot.slane %v1753, 1
      %v1756 = vsel %vm462, %v1751, %v1755
      %v1758 = vshrl.u32 %v1627, 16
      %v1760 = vshll.u32 %v1627, 16
      %v1762 = vrot.slane %v1760, 1
      %v1763 = vor.u32 %v1758, %v1762
      %v1765 = vshll.u32 %v1675, 16
      %v1767 = vrot.slane %v1765, 1
      %v1768 = vsel %vm462, %v1763, %v1767
      %v1770 = vshrl.u32 %v1628, 16
      %v1772 = vshll.u32 %v1628, 16
      %v1774 = vrot.slane %v1772, 1
      %v1775 = vor.u32 %v1770, %v1774
      %v1777 = vshll.u32 %v1676, 16
      %v1779 = vrot.slane %v1777, 1
      %v1780 = vsel %vm462, %v1775, %v1779
      %v1782 = vshrl.u32 %v1629, 16
      %v1784 = vshll.u32 %v1629, 16
      %v1786 = vrot.slane %v1784, 1
      %v1787 = vor.u32 %v1782, %v1786
      %v1789 = vshll.u32 %v1677, 16
      %v1791 = vrot.slane %v1789, 1
      %v1792 = vsel %vm462, %v1787, %v1791
      %v1794 = vshrl.u32 %v1630, 16
      %v1796 = vshll.u32 %v1630, 16
      %v1798 = vrot.slane %v1796, 1
      %v1799 = vor.u32 %v1794, %v1798
      %v1801 = vshll.u32 %v1678, 16
      %v1803 = vrot.slane %v1801, 1
      %v1804 = vsel %vm462, %v1799, %v1803
      %v1806 = vshrl.u32 %v1631, 16
      %v1808 = vshll.u32 %v1631, 16
      %v1810 = vrot.slane %v1808, 1
      %v1811 = vor.u32 %v1806, %v1810
      %v1813 = vshll.u32 %v1679, 16
      %v1815 = vrot.slane %v1813, 1
      %v1816 = vsel %vm462, %v1811, %v1815
      %v1818 = vshrl.u32 %v1632, 16
      %v1820 = vshll.u32 %v1632, 16
      %v1822 = vrot.slane %v1820, 1
      %v1823 = vor.u32 %v1818, %v1822
      %v1825 = vshll.u32 %v1680, 16
      %v1827 = vrot.slane %v1825, 1
      %v1828 = vsel %vm462, %v1823, %v1827
      %v1830 = vshrl.u32 %v1633, 16
      %v1832 = vshll.u32 %v1633, 16
      %v1834 = vrot.slane %v1832, 1
      %v1835 = vor.u32 %v1830, %v1834
      %v1837 = vshll.u32 %v1681, 16
      %v1839 = vrot.slane %v1837, 1
      %v1840 = vsel %vm462, %v1835, %v1839
      %v1842 = vshrl.u32 %v1634, 16
      %v1844 = vshll.u32 %v1634, 16
      %v1846 = vrot.slane %v1844, 1
      %v1847 = vor.u32 %v1842, %v1846
      %v1849 = vshll.u32 %v1682, 16
      %v1851 = vrot.slane %v1849, 1
      %v1852 = vsel %vm462, %v1847, %v1851
      %v1854 = vshrl.u32 %v1635, 16
      %v1856 = vshll.u32 %v1635, 16
      %v1858 = vrot.slane %v1856, 1
      %v1859 = vor.u32 %v1854, %v1858
      %v1861 = vshll.u32 %v1683, 16
      %v1863 = vrot.slane %v1861, 1
      %v1864 = vsel %vm462, %v1859, %v1863
      %v1866 = vshrl.u32 %v1636, 16
      %v1868 = vshll.u32 %v1636, 16
      %v1870 = vrot.slane %v1868, 1
      %v1871 = vor.u32 %v1866, %v1870
      %v1873 = vshll.u32 %v1684, 16
      %v1875 = vrot.slane %v1873, 1
      %v1876 = vsel %vm462, %v1871, %v1875
      %1877 = vrot.lane.b32.xlu0 %v1696, 4
      %v1878 = vpop.permute.xlu0 %1877
      %1879 = vrot.lane.b32.xlu0 %v1708, 4
      %v1880 = vpop.permute.xlu0 %1879
      %1881 = vrot.lane.b32.xlu0 %v1720, 4
      %v1882 = vpop.permute.xlu0 %1881
      %1883 = vrot.lane.b32.xlu0 %v1732, 4
      %v1884 = vpop.permute.xlu0 %1883
      %1885 = vrot.lane.b32.xlu0 %v1744, 4
      %v1886 = vpop.permute.xlu0 %1885
      %1887 = vrot.lane.b32.xlu0 %v1756, 4
      %v1888 = vpop.permute.xlu0 %1887
      %1889 = vrot.lane.b32.xlu0 %v1768, 4
      %v1890 = vpop.permute.xlu0 %1889
      %1891 = vrot.lane.b32.xlu0 %v1780, 4
      %v1892 = vpop.permute.xlu0 %1891
      %1893 = vrot.lane.b32.xlu0 %v1792, 4
      %v1894 = vpop.permute.xlu0 %1893
      %1895 = vrot.lane.b32.xlu0 %v1804, 4
      %v1896 = vpop.permute.xlu0 %1895
      %1897 = vrot.lane.b32.xlu0 %v1816, 4
      %v1898 = vpop.permute.xlu0 %1897
      %1899 = vrot.lane.b32.xlu0 %v1828, 4
      %v1900 = vpop.permute.xlu0 %1899
      %1901 = vrot.lane.b32.xlu0 %v1840, 4
      %v1902 = vpop.permute.xlu0 %1901
      %1903 = vrot.lane.b32.xlu0 %v1852, 4
      %v1904 = vpop.permute.xlu0 %1903
      %1905 = vrot.lane.b32.xlu0 %v1864, 4
      %v1906 = vpop.permute.xlu0 %1905
      %1907 = vrot.lane.b32.xlu0 %v1876, 4
      %v1908 = vpop.permute.xlu0 %1907
      %v1909 = vrot.slane %v1621, 1
      %v1910 = vrot.slane %v1669, 1
      %v1911 = vsel %vm687, %v1909, %v1910
      %v1912 = vrot.slane %v1622, 1
      %v1913 = vrot.slane %v1670, 1
      %v1914 = vsel %vm687, %v1912, %v1913
      %v1915 = vrot.slane %v1623, 1
      %v1916 = vrot.slane %v1671, 1
      %v1917 = vsel %vm687, %v1915, %v1916
      %v1918 = vrot.slane %v1624, 1
      %v1919 = vrot.slane %v1672, 1
      %v1920 = vsel %vm687, %v1918, %v1919
      %v1921 = vrot.slane %v1625, 1
      %v1922 = vrot.slane %v1673, 1
      %v1923 = vsel %vm687, %v1921, %v1922
      %v1924 = vrot.slane %v1626, 1
      %v1925 = vrot.slane %v1674, 1
      %v1926 = vsel %vm687, %v1924, %v1925
      %v1927 = vrot.slane %v1627, 1
      %v1928 = vrot.slane %v1675, 1
      %v1929 = vsel %vm687, %v1927, %v1928
      %v1930 = vrot.slane %v1628, 1
      %v1931 = vrot.slane %v1676, 1
      %v1932 = vsel %vm687, %v1930, %v1931
      %v1933 = vrot.slane %v1629, 1
      %v1934 = vrot.slane %v1677, 1
      %v1935 = vsel %vm687, %v1933, %v1934
      %v1936 = vrot.slane %v1630, 1
      %v1937 = vrot.slane %v1678, 1
      %v1938 = vsel %vm687, %v1936, %v1937
      %v1939 = vrot.slane %v1631, 1
      %v1940 = vrot.slane %v1679, 1
      %v1941 = vsel %vm687, %v1939, %v1940
      %v1942 = vrot.slane %v1632, 1
      %v1943 = vrot.slane %v1680, 1
      %v1944 = vsel %vm687, %v1942, %v1943
      %v1945 = vrot.slane %v1633, 1
      %v1946 = vrot.slane %v1681, 1
      %v1947 = vsel %vm687, %v1945, %v1946
      %v1948 = vrot.slane %v1634, 1
      %v1949 = vrot.slane %v1682, 1
      %v1950 = vsel %vm687, %v1948, %v1949
      %v1951 = vrot.slane %v1635, 1
      %v1952 = vrot.slane %v1683, 1
      %v1953 = vsel %vm687, %v1951, %v1952
      %v1954 = vrot.slane %v1636, 1
      %v1955 = vrot.slane %v1684, 1
      %v1956 = vsel %vm687, %v1954, %v1955
      %1957 = vrot.lane.b32.xlu0 %v1911, 8
      %v1958 = vpop.permute.xlu0 %1957
      %1959 = vrot.lane.b32.xlu0 %v1914, 8
      %v1960 = vpop.permute.xlu0 %1959
      %1961 = vrot.lane.b32.xlu0 %v1917, 8
      %v1962 = vpop.permute.xlu0 %1961
      %1963 = vrot.lane.b32.xlu0 %v1920, 8
      %v1964 = vpop.permute.xlu0 %1963
      %1965 = vrot.lane.b32.xlu0 %v1923, 8
      %v1966 = vpop.permute.xlu0 %1965
      %1967 = vrot.lane.b32.xlu0 %v1926, 8
      %v1968 = vpop.permute.xlu0 %1967
      %1969 = vrot.lane.b32.xlu0 %v1929, 8
      %v1970 = vpop.permute.xlu0 %1969
      %1971 = vrot.lane.b32.xlu0 %v1932, 8
      %v1972 = vpop.permute.xlu0 %1971
      %1973 = vrot.lane.b32.xlu0 %v1935, 8
      %v1974 = vpop.permute.xlu0 %1973
      %1975 = vrot.lane.b32.xlu0 %v1938, 8
      %v1976 = vpop.permute.xlu0 %1975
      %1977 = vrot.lane.b32.xlu0 %v1941, 8
      %v1978 = vpop.permute.xlu0 %1977
      %1979 = vrot.lane.b32.xlu0 %v1944, 8
      %v1980 = vpop.permute.xlu0 %1979
      %1981 = vrot.lane.b32.xlu0 %v1947, 8
      %v1982 = vpop.permute.xlu0 %1981
      %1983 = vrot.lane.b32.xlu0 %v1950, 8
      %v1984 = vpop.permute.xlu0 %1983
      %1985 = vrot.lane.b32.xlu0 %v1953, 8
      %v1986 = vpop.permute.xlu0 %1985
      %1987 = vrot.lane.b32.xlu0 %v1956, 8
      %v1988 = vpop.permute.xlu0 %1987
      %v1990 = vsel %vm768, %v1621, %v1878
      %v1992 = vsel %vm768, %v1622, %v1880
      %v1994 = vsel %vm768, %v1623, %v1882
      %v1996 = vsel %vm768, %v1624, %v1884
      %v1998 = vsel %vm768, %v1625, %v1886
      %v2000 = vsel %vm768, %v1626, %v1888
      %v2002 = vsel %vm768, %v1627, %v1890
      %v2004 = vsel %vm768, %v1628, %v1892
      %v2006 = vsel %vm768, %v1629, %v1894
      %v2008 = vsel %vm768, %v1630, %v1896
      %v2010 = vsel %vm768, %v1631, %v1898
      %v2012 = vsel %vm768, %v1632, %v1900
      %v2014 = vsel %vm768, %v1633, %v1902
      %v2016 = vsel %vm768, %v1634, %v1904
      %v2018 = vsel %vm768, %v1635, %v1906
      %v2020 = vsel %vm768, %v1636, %v1908
      %v2022 = vsel %vm801, %v1990, %v1958
      %v2024 = vsel %vm801, %v1992, %v1960
      %v2026 = vsel %vm801, %v1994, %v1962
      %v2028 = vsel %vm801, %v1996, %v1964
      %v2030 = vsel %vm801, %v1998, %v1966
      %v2032 = vsel %vm801, %v2000, %v1968
      %v2034 = vsel %vm801, %v2002, %v1970
      %v2036 = vsel %vm801, %v2004, %v1972
      %v2038 = vsel %vm801, %v2006, %v1974
      %v2040 = vsel %vm801, %v2008, %v1976
      %v2042 = vsel %vm801, %v2010, %v1978
      %v2044 = vsel %vm801, %v2012, %v1980
      %v2046 = vsel %vm801, %v2014, %v1982
      %v2048 = vsel %vm801, %v2016, %v1984
      %v2050 = vsel %vm801, %v2018, %v1986
      %v2052 = vsel %vm801, %v2020, %v1988
      %2053 = vrot.lane.b32.xlu0 %v1382, 104
      %v2054 = vpop.permute.xlu0 %2053
      %v2056 = vsel %vm1385, %v2054, 0
      %v2058 = vsel %vm1385, %v2022, 0
      %v2060 = vsel %vm1385, %v2024, 0
      %v2062 = vsel %vm1385, %v2026, 0
      %v2064 = vsel %vm1385, %v2028, 0
      %v2066 = vsel %vm1385, %v2030, 0
      %v2068 = vsel %vm1385, %v2032, 0
      %v2070 = vsel %vm1385, %v2034, 0
      %v2072 = vsel %vm1385, %v2036, 0
      %v2074 = vsel %vm1385, %v2038, 0
      %v2076 = vsel %vm1385, %v2040, 0
      %v2078 = vsel %vm1385, %v2042, 0
      %v2080 = vsel %vm1385, %v2044, 0
      %v2082 = vsel %vm1385, %v2046, 0
      %v2084 = vsel %vm1385, %v2048, 0
      %v2086 = vsel %vm1385, %v2050, 0
      %v2088 = vsel %vm1385, %v2052, 0
      %2090 = vmatpush.bf16.xpose.msra.mxu0 %v2072
      %2091 = vmatpush.bf16.xpose.msra.mxu0 %v2070
      %2092 = vmatpush.bf16.xpose.msra.mxu0 %v2068
      %2093 = vmatpush.bf16.xpose.msra.mxu0 %v2066
      %2094 = vmatpush.bf16.xpose.msra.mxu0 %v2064
      %2095 = vmatpush.bf16.xpose.msra.mxu0 %v2062
      %2096 = vmatpush.bf16.xpose.msra.mxu0 %v2060
      %2097 = vmatpush.bf16.xpose.msra.mxu0 %v2058
      %2098 = vmatmul.bf16.gmra.mxu0 %v2056
      %v2099 = vpop.f32.mrf.mxu0
      %v2100 = vadd.f32 0.0, %v2099
      %v2101 = vpop.f32.mrf.mxu0
      %2102 = vdwg.mxu0
      %2103 = vmatpush.bf16.xpose.msra.mxu0 %v2088
      %2104 = vmatpush.bf16.xpose.msra.mxu0 %v2086
      %2105 = vmatpush.bf16.xpose.msra.mxu0 %v2084
      %2106 = vmatpush.bf16.xpose.msra.mxu0 %v2082
      %2107 = vmatpush.bf16.xpose.msra.mxu0 %v2080
      %2108 = vmatpush.bf16.xpose.msra.mxu0 %v2078
      %2109 = vmatpush.bf16.xpose.msra.mxu0 %v2076
      %2110 = vmatpush.bf16.xpose.msra.mxu0 %v2074
      %2111 = vmatmul.bf16.gmra.mxu0 %v2056
      %v2112 = vpop.f32.mrf.mxu0
      %v2113 = vadd.f32 0.0, %v2112
      %v2114 = vpop.f32.mrf.mxu0
      %2115 = vdwg.mxu0
      %v2116 = vadd.f32 %v1492, %v2100
      %v2117 = vadd.f32 %v1505, %v2113
      %v2118 = vadd.f32 %v2116, %v2117
      %2119 = vadd.xlane.f32.xlu0 %v2118
      %v2120 = vpop.xlane.xlu0 %2119
      %v2121 = vmul.f32 %v2120, 0.00390625
      %v2122 = vsub.f32 %v2116, %v2121
      %v2123 = vsub.f32 %v2117, %v2121
      %v2124 = vmul.f32 %v2122, %v2122
      %v2125 = vmul.f32 %v2123, %v2123
      %v2126 = vadd.f32 %v2124, %v2125
      %2127 = vadd.xlane.f32.xlu0 %v2126
      %v2128 = vpop.xlane.xlu0 %2127
      %vm2129 = vcmask 7168
      %v2130 = vsel %vm2129, %v2120, %v2128
      %vm2131 = vcmask 15360
      %2132 = vst.msk [vmem:[%s285] sm:$0xff] %vm2131, %v2130
      %p2133 = scmp.lt.s32.totalorder %s18, 1
      %s2134 = scalar_select %p2133, %s18, 1
      %p2135 = scmp.lt.s32.totalorder %s19, 0
      %s2136 = scalar_select %p2135, %s19, 0
      %s2137 = sadd.s32 %s2136, %s2134
      %s2138 = smul.addr %s2137, 8
      %s2139 = scalar_lea.vmem %s3, %s2138
      // Predicated region
      $region33: #{tpu_custom_call.1} parent=31 // pred_check
        %p2140 = pneg %p127
      $region34: #{tpu_custom_call.1} parent=31 // pred_check_branch
        %2142 = sbr.rel (%p2140) target = $region36
      $region35: #{tpu_custom_call.1} parent=31 // pred_region
        _
      $region36: #{tpu_custom_call.1} parent=31 // pred_fallthru
        _
    $region32: #{tpu_custom_call.1} parent=5 // pred_fallthru
      _
    %p2143 = scmp.le.s32.totalorder 2, %s9
    // Predicated region
    $region37: #{tpu_custom_call.1} parent=5 // pred_check
      %p2144 = pneg %p2143
    $region38: #{tpu_custom_call.1} parent=5 // pred_check_branch
      %2146 = sbr.rel (%p2144) target = $region40
    $region39: #{tpu_custom_call.1} parent=5 // pred_region
      %s2147 = ssub.s32 %s9, 2
      // Predicated region
      $region41: #{tpu_custom_call.1} parent=39 // pred_check
        %p2148 = pneg %p133
      $region42: #{tpu_custom_call.1} parent=39 // pred_check_branch
        %2150 = sbr.rel (%p2148) target = $region44
      $region43: #{tpu_custom_call.1} parent=39 // pred_region
        %p2151 = scmp.lt.s32.totalorder %s20, 1
        %s2152 = scalar_select %p2151, %s20, 1
        %p2153 = scmp.lt.s32.totalorder %s21, 0
        %s2154 = scalar_select %p2153, %s21, 0
        %s2155 = sadd.s32 %s2154, %s2152
        %s2156 = smul.addr %s2155, 8
        %s2157 = scalar_lea.vmem %s3, %s2156
      $region44: #{tpu_custom_call.1} parent=39 // pred_fallthru
        _
    $region40: #{tpu_custom_call.1} parent=5 // pred_fallthru
      _
  $region6: #{tpu_custom_call.1} parent=0 // loop_footer
    %s13 = sadd.s32 1, %s9
  $region7: #{tpu_custom_call.1} parent=0 // loop_footer_branch
    %8 = sbr.rel target = $region3
  $region8: #{tpu_custom_call.1} parent=0 // loop_exit
    _

</llo_original>
